<compile_context>
chip_gen: v5e
topology: v5e:2x2
jax: 0.10.0
libtpu: 0.0.40
codegen_flags: <defaults>
</compile_context>

<pallas_src>
import math

import jax
import jax.numpy as jnp
from jax.experimental import pallas as pl
from jax.experimental.pallas import tpu as pltpu


# ----------------------------- parameter slab layout -----------------------------
def slab_layout(D, H):
    """Row offsets of each section inside the packed (rows, 4H) parameter slab."""
    up8 = lambda n: -(-n // 8) * 8
    layout = {}
    r = 0
    for name, rows in (("wih0", D), ("whh0", H), ("c1", 2 * H), ("wout", H), ("vecs", 8)):
        layout[name] = r
        r += up8(rows)
    return layout, r


def pack_params(gru_params, gamma, beta, w_out, b_out):
    """Pack all parameters into one lane-dense f32 slab (done once, outside the hot path)."""
    (wih0, whh0, bih0, bhh0), (wih1, whh1, bih1, bhh1) = gru_params
    D, H = wih0.shape[0], whh0.shape[0]
    H2, H3, H4 = 2 * H, 3 * H, 4 * H
    layout, total_rows = slab_layout(D, H)

    def padlanes(a):
        return jnp.pad(a.astype(jnp.float32), ((0, 0), (0, H4 - a.shape[1])))

    # layer-1 fused gate weight (2H, 4H): columns [r_sum | z_sum | n_ih | n_hh]
    zHH = jnp.zeros((H, H), jnp.float32)
    c1 = jnp.concatenate([
        jnp.concatenate([wih1[:, 0:H], wih1[:, H:H2], wih1[:, H2:H3], zHH], axis=1),
        jnp.concatenate([whh1[:, 0:H], whh1[:, H:H2], zHH, whh1[:, H2:H3]], axis=1),
    ], axis=0)

    # bias rows (pre-summed where the gates sum them anyway)
    b0 = jnp.concatenate([bih0[:, 0:H] + bhh0[:, 0:H],
                          bih0[:, H:H2] + bhh0[:, H:H2],
                          bih0[:, H2:H3]], axis=1)                       # (1, 3H)
    b1 = jnp.concatenate([bih1[:, 0:H] + bhh1[:, 0:H],
                          bih1[:, H:H2] + bhh1[:, H:H2],
                          bih1[:, H2:H3], bhh1[:, H2:H3]], axis=1)       # (1, 4H)
    misc = jnp.concatenate([bhh0[:, H2:H3], gamma, beta], axis=1)        # (1, 3H)
    vecs = jnp.concatenate([padlanes(b0), padlanes(b1), padlanes(misc),
                            padlanes(b_out),
                            jnp.zeros((4, H4), jnp.float32)], axis=0)    # (8, 4H)

    slab = jnp.zeros((total_rows, H4), jnp.float32)
    slab = slab.at[layout["wih0"]:layout["wih0"] + D, :].set(padlanes(wih0))
    slab = slab.at[layout["whh0"]:layout["whh0"] + H, :].set(padlanes(whh0))
    slab = slab.at[layout["c1"]:layout["c1"] + H2, :].set(c1)
    slab = slab.at[layout["wout"]:layout["wout"] + H, :].set(padlanes(w_out))
    slab = slab.at[layout["vecs"]:layout["vecs"] + 8, :].set(vecs)
    return slab


# ----------------------------- fused forward kernel -----------------------------
def make_fused_kernel(B, T, D, H):
    """2-layer GRU + BN(train-mode batch stats) + ReLU + fused [fcx|fcy|fcz] head."""
    H2, H3, H4 = 2 * H, 3 * H, 4 * H
    layout, _ = slab_layout(D, H)
    R_WIH0, R_WHH0, R_C1, R_WOUT, R_VECS = (
        layout[k] for k in ("wih0", "whh0", "c1", "wout", "vecs"))

    def kernel(x_ref, slab_ref, o_ref):
        f32 = jnp.float32

        # ---- one-time loads: the whole parameter set is VMEM-resident ----
        vecs = slab_ref[R_VECS:R_VECS + 8, :]            # (8, 4H) small-vector block
        b0 = vecs[0:1, :]                                # layer-0 bias (r+,z+,n_ih), folded
        b1 = jnp.broadcast_to(vecs[1:2, :], (B, H4))     # layer-1 fused bias, pre-broadcast
        bhh0n = jnp.broadcast_to(vecs[2:3, 0:H], (B, H)) # layer-0 b_hn, pre-broadcast
        gamma = vecs[2:3, H:H2]
        beta = vecs[2:3, H2:H3]
        b_out = vecs[3:4, :]

        whh0 = slab_ref[R_WHH0:R_WHH0 + H, :]            # (H, 4H), cols 3H: are zero
        c1 = slab_ref[R_C1:R_C1 + H2, :]                 # (2H, 4H) fused layer-1 gates

        # ---- hoisted layer-0 input projection: one (T*B, D) x (D, 4H) matmul ----
        gi0 = jnp.dot(x_ref[...], slab_ref[R_WIH0:R_WIH0 + D, :],
                      preferred_element_type=f32) + b0    # (T*B, 4H), biases folded

        def cell_l0(gi_t, gh, h):
            r = jax.nn.sigmoid(gi_t[:, 0:H] + gh[:, 0:H])
            z = jax.nn.sigmoid(gi_t[:, H:H2] + gh[:, H:H2])
            n = jnp.tanh(gi_t[:, H2:H3] + r * (gh[:, H2:H3] + bhh0n))
            return (1.0 - z) * n + z * h

        def cell_l1(g, h):
            r = jax.nn.sigmoid(g[:, 0:H])
            z = jax.nn.sigmoid(g[:, H:H2])
            n = jnp.tanh(g[:, H2:H3] + r * g[:, H3:H4])
            return (1.0 - z) * n + z * h

        # ---- t = 0: h == 0 for both layers -> skip both hidden-state matmuls ----
        gi_t = gi0[0:B, :]
        r0 = jax.nn.sigmoid(gi_t[:, 0:H])
        z0 = jax.nn.sigmoid(gi_t[:, H:H2])
        n0 = jnp.tanh(gi_t[:, H2:H3] + r0 * bhh0n)
        h0 = (1.0 - z0) * n0

        g1 = jnp.dot(h0, c1[0:H, :], preferred_element_type=f32) + b1
        r1 = jax.nn.sigmoid(g1[:, 0:H])
        z1 = jax.nn.sigmoid(g1[:, H:H2])
        n1 = jnp.tanh(g1[:, H2:H3] + r1 * g1[:, H3:H4])
        h1 = (1.0 - z1) * n1

        # ---- t = 1..T-1: one small matmul per layer per step (layer-1 gates fused) ----
        for t in range(1, T):                            # T static & small -> full unroll
            gi_t = gi0[t * B:(t + 1) * B, :]             # contiguous static row slice
            gh0 = jnp.dot(h0, whh0, preferred_element_type=f32)
            h0 = cell_l0(gi_t, gh0, h0)
            cat = jnp.concatenate([h0, h1], axis=-1)     # (B, 2H)
            g1 = jnp.dot(cat, c1, preferred_element_type=f32) + b1   # 128-lane result
            h1 = cell_l1(g1, h1)

        # ---- BN (train-mode batch stats, nn.BatchNorm1d) + ReLU + linear head ----
        mean = jnp.mean(h1, axis=0, keepdims=True)
        diff = h1 - mean
        var = jnp.mean(diff * diff, axis=0, keepdims=True)           # biased variance
        y = diff * jax.lax.rsqrt(var + 1e-5) * gamma + beta
        y = jnp.maximum(y, 0.0)                                      # ReLU
        out = jnp.dot(y, slab_ref[R_WOUT:R_WOUT + H, :],
                      preferred_element_type=f32) + b_out            # (B, 4H), cols 0:3 valid
        o_ref[...] = out.astype(o_ref.dtype)

    return kernel


def rnn_forward(x_btd, slab, hidden):
    """x_btd: (B, T, 310) batch_first like the PyTorch module. Returns (outx, outy, outz)."""
    B, T, D = x_btd.shape
    H = hidden
    # one-time layout op: time-major (T*B, D) so per-step slices are contiguous in-kernel
    x_tm = jnp.transpose(x_btd, (1, 0, 2)).reshape(T * B, D).astype(jnp.float32)
    out = pl.pallas_call(
        make_fused_kernel(B, T, D, H),
        out_shape=jax.ShapeDtypeStruct((B, 4 * H), jnp.float32),
        in_specs=[pl.BlockSpec(memory_space=pltpu.MemorySpace.VMEM)] * 2,
        out_specs=pl.BlockSpec(memory_space=pltpu.MemorySpace.VMEM),
    )(x_tm, slab)
    return out[:, 0:1], out[:, 1:2], out[:, 2:3]


# ----------------------------- pure-JAX reference -----------------------------
def ref_forward(x_btd, gru_params, gamma, beta, w_out, b_out):
    x = jnp.transpose(x_btd, (1, 0, 2)).astype(jnp.float32)      # (T, B, D)
    for (wih, whh, bih, bhh) in gru_params:
        H = whh.shape[0]

        def step(h, x_t, wih=wih, whh=whh, bih=bih, bhh=bhh, H=H):
            gi = x_t @ wih + bih
            gh = h @ whh + bhh
            r = jax.nn.sigmoid(gi[:, 0:H] + gh[:, 0:H])
            z = jax.nn.sigmoid(gi[:, H:2 * H] + gh[:, H:2 * H])
            n = jnp.tanh(gi[:, 2 * H:3 * H] + r * gh[:, 2 * H:3 * H])
            h_new = (1.0 - z) * n + z * h
            return h_new, h_new

        h0 = jnp.zeros((x.shape[1], H), jnp.float32)
        _, x = jax.lax.scan(step, h0, x)
    h_last = x[-1]
    mean = jnp.mean(h_last, axis=0, keepdims=True)
    var = jnp.mean((h_last - mean) ** 2, axis=0, keepdims=True)
    y = (h_last - mean) / jnp.sqrt(var + 1e-5) * gamma + beta
    y = jnp.maximum(y, 0.0)
    out = y @ w_out + b_out
    return out[:, 0:1], out[:, 1:2], out[:, 2:3]


if __name__ == "__main__":
    B, T, D_IN = 2, 8, 310
    HIDDEN, NUM_LAYERS = 32, 2

    key = jax.random.PRNGKey(0)
    key, kx = jax.random.split(key)
    x = jax.random.normal(kx, (B, T, D_IN), dtype=jnp.float32)

    # ---- deterministic parameter init (PyTorch-style U(-1/sqrt(H), 1/sqrt(H))) ----
    bound = 1.0 / math.sqrt(HIDDEN)
    gru_params = []
    for layer in range(NUM_LAYERS):
        d = D_IN if layer == 0 else HIDDEN
        key, k1, k2, k3, k4 = jax.random.split(key, 5)
        # gate-concatenated layout: (D, 3H), (H, 3H), (1, 3H), (1, 3H), order r|z|n
        wih = jax.random.uniform(k1, (d, 3 * HIDDEN), jnp.float32, -bound, bound)
        whh = jax.random.uniform(k2, (HIDDEN, 3 * HIDDEN), jnp.float32, -bound, bound)
        bih = jax.random.uniform(k3, (1, 3 * HIDDEN), jnp.float32, -bound, bound)
        bhh = jax.random.uniform(k4, (1, 3 * HIDDEN), jnp.float32, -bound, bound)
        gru_params.append((wih, whh, bih, bhh))

    # BatchNorm1d defaults: weight=1, bias=0 (train-mode batch statistics)
    gamma = jnp.ones((1, HIDDEN), jnp.float32)
    beta = jnp.zeros((1, HIDDEN), jnp.float32)

    # fcx / fcy / fcz stacked into one (H, 3) matrix, column order [x, y, z]
    key, kw, kb = jax.random.split(key, 3)
    w_out = jax.random.uniform(kw, (HIDDEN, 3), jnp.float32, -bound, bound)
    b_out = jax.random.uniform(kb, (1, 3), jnp.float32, -bound, bound)

    # pack once (parameter-setup time), call the fused kernel
    slab = pack_params(gru_params, gamma, beta, w_out, b_out)
    outx, outy, outz = rnn_forward(x, slab, HIDDEN)
    jax.block_until_ready((outx, outy, outz))

    # sanity check against a pure-JAX reference
    rx, ry, rz = ref_forward(x, gru_params, gamma, beta, w_out, b_out)
    assert outx.shape == (B, 1) and outy.shape == (B, 1) and outz.shape == (B, 1)
    assert jnp.allclose(outx, rx, atol=1e-3, rtol=1e-3)
    assert jnp.allclose(outy, ry, atol=1e-3, rtol=1e-3)
    assert jnp.allclose(outz, rz, atol=1e-3, rtol=1e-3)

    print("KERNEL_OK")
</pallas_src>

<mosaic_0001>
module attributes {stable_mosaic.version = 11 : i64} {
  func.func @kernel(%arg0: memref<16x310xf32, #tpu.memory_space<vmem>>, %arg1: memref<448x128xf32, #tpu.memory_space<vmem>>, %arg2: memref<2x128xf32, #tpu.memory_space<vmem>>) attributes {dimension_semantics = [], scalar_prefetch = 0 : i64, scratch_operands = 0 : i64, tpu.core_type = #tpu.core_type<tc>} {
    %c440 = arith.constant 440 : index
    %c0 = arith.constant 0 : index
    %0 = vector.load %arg1[%c440, %c0] : memref<448x128xf32, #tpu.memory_space<vmem>>, vector<8x128xf32>
    %1 = vector.extract_strided_slice %0 {offsets = [0, 0], sizes = [1, 128], strides = [1, 1]} : vector<8x128xf32> to vector<1x128xf32>
    %2 = vector.extract_strided_slice %0 {offsets = [1, 0], sizes = [1, 128], strides = [1, 1]} : vector<8x128xf32> to vector<1x128xf32>
    %3 = vector.shape_cast %2 : vector<1x128xf32> to vector<1x128xf32>
    %4 = vector.broadcast %3 : vector<1x128xf32> to vector<2x128xf32>
    %5 = vector.extract_strided_slice %0 {offsets = [2, 0], sizes = [1, 32], strides = [1, 1]} : vector<8x128xf32> to vector<1x32xf32>
    %6 = vector.shape_cast %5 : vector<1x32xf32> to vector<1x32xf32>
    %7 = vector.broadcast %6 : vector<1x32xf32> to vector<2x32xf32>
    %8 = vector.extract_strided_slice %0 {offsets = [2, 32], sizes = [1, 32], strides = [1, 1]} : vector<8x128xf32> to vector<1x32xf32>
    %9 = vector.extract_strided_slice %0 {offsets = [2, 64], sizes = [1, 32], strides = [1, 1]} : vector<8x128xf32> to vector<1x32xf32>
    %10 = vector.extract_strided_slice %0 {offsets = [3, 0], sizes = [1, 128], strides = [1, 1]} : vector<8x128xf32> to vector<1x128xf32>
    %c312 = arith.constant 312 : index
    %c0_0 = arith.constant 0 : index
    %11 = vector.load %arg1[%c312, %c0_0] : memref<448x128xf32, #tpu.memory_space<vmem>>, vector<32x128xf32>
    %c344 = arith.constant 344 : index
    %c0_1 = arith.constant 0 : index
    %12 = vector.load %arg1[%c344, %c0_1] : memref<448x128xf32, #tpu.memory_space<vmem>>, vector<64x128xf32>
    %c0_2 = arith.constant 0 : index
    %c0_3 = arith.constant 0 : index
    %13 = vector.load %arg0[%c0_2, %c0_3] : memref<16x310xf32, #tpu.memory_space<vmem>>, vector<16x310xf32>
    %c0_4 = arith.constant 0 : index
    %c0_5 = arith.constant 0 : index
    %14 = vector.load %arg1[%c0_4, %c0_5] : memref<448x128xf32, #tpu.memory_space<vmem>>, vector<310x128xf32>
    %cst = arith.constant dense<0.000000e+00> : vector<16x128xf32>
    %15 = tpu.matmul %13, %14, %cst {dimension_numbers = #tpu.dot_dimension_numbers<[1], [0], [0], [1], [0, 0, 1, 1], [], []>} : vector<16x310xf32>, vector<310x128xf32>, vector<16x128xf32> -> vector<16x128xf32>
    %16 = vector.broadcast %1 : vector<1x128xf32> to vector<16x128xf32>
    %17 = arith.addf %15, %16 : vector<16x128xf32>
    %18 = vector.extract_strided_slice %17 {offsets = [0, 0], sizes = [2, 128], strides = [1, 1]} : vector<16x128xf32> to vector<2x128xf32>
    %19 = vector.extract_strided_slice %18 {offsets = [0, 0], sizes = [2, 32], strides = [1, 1]} : vector<2x128xf32> to vector<2x32xf32>
    %20 = arith.negf %19 : vector<2x32xf32>
    %21 = math.exp %20 : vector<2x32xf32>
    %cst_6 = arith.constant 1.000000e+00 : f32
    %22 = vector.broadcast %cst_6 : f32 to vector<2x32xf32>
    %23 = arith.addf %22, %21 : vector<2x32xf32>
    %24 = arith.divf %22, %23 : vector<2x32xf32>
    %25 = vector.extract_strided_slice %18 {offsets = [0, 32], sizes = [2, 32], strides = [1, 1]} : vector<2x128xf32> to vector<2x32xf32>
    %26 = arith.negf %25 : vector<2x32xf32>
    %27 = math.exp %26 : vector<2x32xf32>
    %cst_7 = arith.constant 1.000000e+00 : f32
    %28 = vector.broadcast %cst_7 : f32 to vector<2x32xf32>
    %29 = arith.addf %28, %27 : vector<2x32xf32>
    %30 = arith.divf %28, %29 : vector<2x32xf32>
    %31 = vector.extract_strided_slice %18 {offsets = [0, 64], sizes = [2, 32], strides = [1, 1]} : vector<2x128xf32> to vector<2x32xf32>
    %32 = arith.mulf %24, %7 : vector<2x32xf32>
    %33 = arith.addf %31, %32 : vector<2x32xf32>
    %34 = math.tanh %33 : vector<2x32xf32>
    %cst_8 = arith.constant 1.000000e+00 : f32
    %35 = vector.broadcast %cst_8 : f32 to vector<2x32xf32>
    %36 = arith.subf %35, %30 : vector<2x32xf32>
    %37 = arith.mulf %36, %34 : vector<2x32xf32>
    %38 = vector.extract_strided_slice %12 {offsets = [0, 0], sizes = [32, 128], strides = [1, 1]} : vector<64x128xf32> to vector<32x128xf32>
    %cst_9 = arith.constant dense<0.000000e+00> : vector<2x128xf32>
    %39 = tpu.matmul %37, %38, %cst_9 {dimension_numbers = #tpu.dot_dimension_numbers<[1], [0], [0], [1], [0, 0, 1, 1], [], []>} : vector<2x32xf32>, vector<32x128xf32>, vector<2x128xf32> -> vector<2x128xf32>
    %40 = arith.addf %39, %4 : vector<2x128xf32>
    %41 = vector.extract_strided_slice %40 {offsets = [0, 0], sizes = [2, 32], strides = [1, 1]} : vector<2x128xf32> to vector<2x32xf32>
    %42 = arith.negf %41 : vector<2x32xf32>
    %43 = math.exp %42 : vector<2x32xf32>
    %cst_10 = arith.constant 1.000000e+00 : f32
    %44 = vector.broadcast %cst_10 : f32 to vector<2x32xf32>
    %45 = arith.addf %44, %43 : vector<2x32xf32>
    %46 = arith.divf %44, %45 : vector<2x32xf32>
    %47 = vector.extract_strided_slice %40 {offsets = [0, 32], sizes = [2, 32], strides = [1, 1]} : vector<2x128xf32> to vector<2x32xf32>
    %48 = arith.negf %47 : vector<2x32xf32>
    %49 = math.exp %48 : vector<2x32xf32>
    %cst_11 = arith.constant 1.000000e+00 : f32
    %50 = vector.broadcast %cst_11 : f32 to vector<2x32xf32>
    %51 = arith.addf %50, %49 : vector<2x32xf32>
    %52 = arith.divf %50, %51 : vector<2x32xf32>
    %53 = vector.extract_strided_slice %40 {offsets = [0, 64], sizes = [2, 32], strides = [1, 1]} : vector<2x128xf32> to vector<2x32xf32>
    %54 = vector.extract_strided_slice %40 {offsets = [0, 96], sizes = [2, 32], strides = [1, 1]} : vector<2x128xf32> to vector<2x32xf32>
    %55 = arith.mulf %46, %54 : vector<2x32xf32>
    %56 = arith.addf %53, %55 : vector<2x32xf32>
    %57 = math.tanh %56 : vector<2x32xf32>
    %cst_12 = arith.constant 1.000000e+00 : f32
    %58 = vector.broadcast %cst_12 : f32 to vector<2x32xf32>
    %59 = arith.subf %58, %52 : vector<2x32xf32>
    %60 = arith.mulf %59, %57 : vector<2x32xf32>
    %61 = vector.extract_strided_slice %17 {offsets = [2, 0], sizes = [2, 128], strides = [1, 1]} : vector<16x128xf32> to vector<2x128xf32>
    %cst_13 = arith.constant dense<0.000000e+00> : vector<2x128xf32>
    %62 = tpu.matmul %37, %11, %cst_13 {dimension_numbers = #tpu.dot_dimension_numbers<[1], [0], [0], [1], [0, 0, 1, 1], [], []>} : vector<2x32xf32>, vector<32x128xf32>, vector<2x128xf32> -> vector<2x128xf32>
    %63 = vector.extract_strided_slice %61 {offsets = [0, 0], sizes = [2, 32], strides = [1, 1]} : vector<2x128xf32> to vector<2x32xf32>
    %64 = vector.extract_strided_slice %62 {offsets = [0, 0], sizes = [2, 32], strides = [1, 1]} : vector<2x128xf32> to vector<2x32xf32>
    %65 = arith.addf %63, %64 : vector<2x32xf32>
    %66 = arith.negf %65 : vector<2x32xf32>
    %67 = math.exp %66 : vector<2x32xf32>
    %cst_14 = arith.constant 1.000000e+00 : f32
    %68 = vector.broadcast %cst_14 : f32 to vector<2x32xf32>
    %69 = arith.addf %68, %67 : vector<2x32xf32>
    %70 = arith.divf %68, %69 : vector<2x32xf32>
    %71 = vector.extract_strided_slice %61 {offsets = [0, 32], sizes = [2, 32], strides = [1, 1]} : vector<2x128xf32> to vector<2x32xf32>
    %72 = vector.extract_strided_slice %62 {offsets = [0, 32], sizes = [2, 32], strides = [1, 1]} : vector<2x128xf32> to vector<2x32xf32>
    %73 = arith.addf %71, %72 : vector<2x32xf32>
    %74 = arith.negf %73 : vector<2x32xf32>
    %75 = math.exp %74 : vector<2x32xf32>
    %cst_15 = arith.constant 1.000000e+00 : f32
    %76 = vector.broadcast %cst_15 : f32 to vector<2x32xf32>
    %77 = arith.addf %76, %75 : vector<2x32xf32>
    %78 = arith.divf %76, %77 : vector<2x32xf32>
    %79 = vector.extract_strided_slice %61 {offsets = [0, 64], sizes = [2, 32], strides = [1, 1]} : vector<2x128xf32> to vector<2x32xf32>
    %80 = vector.extract_strided_slice %62 {offsets = [0, 64], sizes = [2, 32], strides = [1, 1]} : vector<2x128xf32> to vector<2x32xf32>
    %81 = arith.addf %80, %7 : vector<2x32xf32>
    %82 = arith.mulf %70, %81 : vector<2x32xf32>
    %83 = arith.addf %79, %82 : vector<2x32xf32>
    %84 = math.tanh %83 : vector<2x32xf32>
    %cst_16 = arith.constant 1.000000e+00 : f32
    %85 = vector.broadcast %cst_16 : f32 to vector<2x32xf32>
    %86 = arith.subf %85, %78 : vector<2x32xf32>
    %87 = arith.mulf %86, %84 : vector<2x32xf32>
    %88 = arith.mulf %78, %37 : vector<2x32xf32>
    %89 = arith.addf %87, %88 : vector<2x32xf32>
    %90 = tpu.concatenate %89, %60 in 1 : vector<2x32xf32>, vector<2x32xf32> -> vector<2x64xf32>
    %cst_17 = arith.constant dense<0.000000e+00> : vector<2x128xf32>
    %91 = tpu.matmul %90, %12, %cst_17 {dimension_numbers = #tpu.dot_dimension_numbers<[1], [0], [0], [1], [0, 0, 1, 1], [], []>} : vector<2x64xf32>, vector<64x128xf32>, vector<2x128xf32> -> vector<2x128xf32>
    %92 = arith.addf %91, %4 : vector<2x128xf32>
    %93 = vector.extract_strided_slice %92 {offsets = [0, 0], sizes = [2, 32], strides = [1, 1]} : vector<2x128xf32> to vector<2x32xf32>
    %94 = arith.negf %93 : vector<2x32xf32>
    %95 = math.exp %94 : vector<2x32xf32>
    %cst_18 = arith.constant 1.000000e+00 : f32
    %96 = vector.broadcast %cst_18 : f32 to vector<2x32xf32>
    %97 = arith.addf %96, %95 : vector<2x32xf32>
    %98 = arith.divf %96, %97 : vector<2x32xf32>
    %99 = vector.extract_strided_slice %92 {offsets = [0, 32], sizes = [2, 32], strides = [1, 1]} : vector<2x128xf32> to vector<2x32xf32>
    %100 = arith.negf %99 : vector<2x32xf32>
    %101 = math.exp %100 : vector<2x32xf32>
    %cst_19 = arith.constant 1.000000e+00 : f32
    %102 = vector.broadcast %cst_19 : f32 to vector<2x32xf32>
    %103 = arith.addf %102, %101 : vector<2x32xf32>
    %104 = arith.divf %102, %103 : vector<2x32xf32>
    %105 = vector.extract_strided_slice %92 {offsets = [0, 64], sizes = [2, 32], strides = [1, 1]} : vector<2x128xf32> to vector<2x32xf32>
    %106 = vector.extract_strided_slice %92 {offsets = [0, 96], sizes = [2, 32], strides = [1, 1]} : vector<2x128xf32> to vector<2x32xf32>
    %107 = arith.mulf %98, %106 : vector<2x32xf32>
    %108 = arith.addf %105, %107 : vector<2x32xf32>
    %109 = math.tanh %108 : vector<2x32xf32>
    %cst_20 = arith.constant 1.000000e+00 : f32
    %110 = vector.broadcast %cst_20 : f32 to vector<2x32xf32>
    %111 = arith.subf %110, %104 : vector<2x32xf32>
    %112 = arith.mulf %111, %109 : vector<2x32xf32>
    %113 = arith.mulf %104, %60 : vector<2x32xf32>
    %114 = arith.addf %112, %113 : vector<2x32xf32>
    %115 = vector.extract_strided_slice %17 {offsets = [4, 0], sizes = [2, 128], strides = [1, 1]} : vector<16x128xf32> to vector<2x128xf32>
    %cst_21 = arith.constant dense<0.000000e+00> : vector<2x128xf32>
    %116 = tpu.matmul %89, %11, %cst_21 {dimension_numbers = #tpu.dot_dimension_numbers<[1], [0], [0], [1], [0, 0, 1, 1], [], []>} : vector<2x32xf32>, vector<32x128xf32>, vector<2x128xf32> -> vector<2x128xf32>
    %117 = vector.extract_strided_slice %115 {offsets = [0, 0], sizes = [2, 32], strides = [1, 1]} : vector<2x128xf32> to vector<2x32xf32>
    %118 = vector.extract_strided_slice %116 {offsets = [0, 0], sizes = [2, 32], strides = [1, 1]} : vector<2x128xf32> to vector<2x32xf32>
    %119 = arith.addf %117, %118 : vector<2x32xf32>
    %120 = arith.negf %119 : vector<2x32xf32>
    %121 = math.exp %120 : vector<2x32xf32>
    %cst_22 = arith.constant 1.000000e+00 : f32
    %122 = vector.broadcast %cst_22 : f32 to vector<2x32xf32>
    %123 = arith.addf %122, %121 : vector<2x32xf32>
    %124 = arith.divf %122, %123 : vector<2x32xf32>
    %125 = vector.extract_strided_slice %115 {offsets = [0, 32], sizes = [2, 32], strides = [1, 1]} : vector<2x128xf32> to vector<2x32xf32>
    %126 = vector.extract_strided_slice %116 {offsets = [0, 32], sizes = [2, 32], strides = [1, 1]} : vector<2x128xf32> to vector<2x32xf32>
    %127 = arith.addf %125, %126 : vector<2x32xf32>
    %128 = arith.negf %127 : vector<2x32xf32>
    %129 = math.exp %128 : vector<2x32xf32>
    %cst_23 = arith.constant 1.000000e+00 : f32
    %130 = vector.broadcast %cst_23 : f32 to vector<2x32xf32>
    %131 = arith.addf %130, %129 : vector<2x32xf32>
    %132 = arith.divf %130, %131 : vector<2x32xf32>
    %133 = vector.extract_strided_slice %115 {offsets = [0, 64], sizes = [2, 32], strides = [1, 1]} : vector<2x128xf32> to vector<2x32xf32>
    %134 = vector.extract_strided_slice %116 {offsets = [0, 64], sizes = [2, 32], strides = [1, 1]} : vector<2x128xf32> to vector<2x32xf32>
    %135 = arith.addf %134, %7 : vector<2x32xf32>
    %136 = arith.mulf %124, %135 : vector<2x32xf32>
    %137 = arith.addf %133, %136 : vector<2x32xf32>
    %138 = math.tanh %137 : vector<2x32xf32>
    %cst_24 = arith.constant 1.000000e+00 : f32
    %139 = vector.broadcast %cst_24 : f32 to vector<2x32xf32>
    %140 = arith.subf %139, %132 : vector<2x32xf32>
    %141 = arith.mulf %140, %138 : vector<2x32xf32>
    %142 = arith.mulf %132, %89 : vector<2x32xf32>
    %143 = arith.addf %141, %142 : vector<2x32xf32>
    %144 = tpu.concatenate %143, %114 in 1 : vector<2x32xf32>, vector<2x32xf32> -> vector<2x64xf32>
    %cst_25 = arith.constant dense<0.000000e+00> : vector<2x128xf32>
    %145 = tpu.matmul %144, %12, %cst_25 {dimension_numbers = #tpu.dot_dimension_numbers<[1], [0], [0], [1], [0, 0, 1, 1], [], []>} : vector<2x64xf32>, vector<64x128xf32>, vector<2x128xf32> -> vector<2x128xf32>
    %146 = arith.addf %145, %4 : vector<2x128xf32>
    %147 = vector.extract_strided_slice %146 {offsets = [0, 0], sizes = [2, 32], strides = [1, 1]} : vector<2x128xf32> to vector<2x32xf32>
    %148 = arith.negf %147 : vector<2x32xf32>
    %149 = math.exp %148 : vector<2x32xf32>
    %cst_26 = arith.constant 1.000000e+00 : f32
    %150 = vector.broadcast %cst_26 : f32 to vector<2x32xf32>
    %151 = arith.addf %150, %149 : vector<2x32xf32>
    %152 = arith.divf %150, %151 : vector<2x32xf32>
    %153 = vector.extract_strided_slice %146 {offsets = [0, 32], sizes = [2, 32], strides = [1, 1]} : vector<2x128xf32> to vector<2x32xf32>
    %154 = arith.negf %153 : vector<2x32xf32>
    %155 = math.exp %154 : vector<2x32xf32>
    %cst_27 = arith.constant 1.000000e+00 : f32
    %156 = vector.broadcast %cst_27 : f32 to vector<2x32xf32>
    %157 = arith.addf %156, %155 : vector<2x32xf32>
    %158 = arith.divf %156, %157 : vector<2x32xf32>
    %159 = vector.extract_strided_slice %146 {offsets = [0, 64], sizes = [2, 32], strides = [1, 1]} : vector<2x128xf32> to vector<2x32xf32>
    %160 = vector.extract_strided_slice %146 {offsets = [0, 96], sizes = [2, 32], strides = [1, 1]} : vector<2x128xf32> to vector<2x32xf32>
    %161 = arith.mulf %152, %160 : vector<2x32xf32>
    %162 = arith.addf %159, %161 : vector<2x32xf32>
    %163 = math.tanh %162 : vector<2x32xf32>
    %cst_28 = arith.constant 1.000000e+00 : f32
    %164 = vector.broadcast %cst_28 : f32 to vector<2x32xf32>
    %165 = arith.subf %164, %158 : vector<2x32xf32>
    %166 = arith.mulf %165, %163 : vector<2x32xf32>
    %167 = arith.mulf %158, %114 : vector<2x32xf32>
    %168 = arith.addf %166, %167 : vector<2x32xf32>
    %169 = vector.extract_strided_slice %17 {offsets = [6, 0], sizes = [2, 128], strides = [1, 1]} : vector<16x128xf32> to vector<2x128xf32>
    %cst_29 = arith.constant dense<0.000000e+00> : vector<2x128xf32>
    %170 = tpu.matmul %143, %11, %cst_29 {dimension_numbers = #tpu.dot_dimension_numbers<[1], [0], [0], [1], [0, 0, 1, 1], [], []>} : vector<2x32xf32>, vector<32x128xf32>, vector<2x128xf32> -> vector<2x128xf32>
    %171 = vector.extract_strided_slice %169 {offsets = [0, 0], sizes = [2, 32], strides = [1, 1]} : vector<2x128xf32> to vector<2x32xf32>
    %172 = vector.extract_strided_slice %170 {offsets = [0, 0], sizes = [2, 32], strides = [1, 1]} : vector<2x128xf32> to vector<2x32xf32>
    %173 = arith.addf %171, %172 : vector<2x32xf32>
    %174 = arith.negf %173 : vector<2x32xf32>
    %175 = math.exp %174 : vector<2x32xf32>
    %cst_30 = arith.constant 1.000000e+00 : f32
    %176 = vector.broadcast %cst_30 : f32 to vector<2x32xf32>
    %177 = arith.addf %176, %175 : vector<2x32xf32>
    %178 = arith.divf %176, %177 : vector<2x32xf32>
    %179 = vector.extract_strided_slice %169 {offsets = [0, 32], sizes = [2, 32], strides = [1, 1]} : vector<2x128xf32> to vector<2x32xf32>
    %180 = vector.extract_strided_slice %170 {offsets = [0, 32], sizes = [2, 32], strides = [1, 1]} : vector<2x128xf32> to vector<2x32xf32>
    %181 = arith.addf %179, %180 : vector<2x32xf32>
    %182 = arith.negf %181 : vector<2x32xf32>
    %183 = math.exp %182 : vector<2x32xf32>
    %cst_31 = arith.constant 1.000000e+00 : f32
    %184 = vector.broadcast %cst_31 : f32 to vector<2x32xf32>
    %185 = arith.addf %184, %183 : vector<2x32xf32>
    %186 = arith.divf %184, %185 : vector<2x32xf32>
    %187 = vector.extract_strided_slice %169 {offsets = [0, 64], sizes = [2, 32], strides = [1, 1]} : vector<2x128xf32> to vector<2x32xf32>
    %188 = vector.extract_strided_slice %170 {offsets = [0, 64], sizes = [2, 32], strides = [1, 1]} : vector<2x128xf32> to vector<2x32xf32>
    %189 = arith.addf %188, %7 : vector<2x32xf32>
    %190 = arith.mulf %178, %189 : vector<2x32xf32>
    %191 = arith.addf %187, %190 : vector<2x32xf32>
    %192 = math.tanh %191 : vector<2x32xf32>
    %cst_32 = arith.constant 1.000000e+00 : f32
    %193 = vector.broadcast %cst_32 : f32 to vector<2x32xf32>
    %194 = arith.subf %193, %186 : vector<2x32xf32>
    %195 = arith.mulf %194, %192 : vector<2x32xf32>
    %196 = arith.mulf %186, %143 : vector<2x32xf32>
    %197 = arith.addf %195, %196 : vector<2x32xf32>
    %198 = tpu.concatenate %197, %168 in 1 : vector<2x32xf32>, vector<2x32xf32> -> vector<2x64xf32>
    %cst_33 = arith.constant dense<0.000000e+00> : vector<2x128xf32>
    %199 = tpu.matmul %198, %12, %cst_33 {dimension_numbers = #tpu.dot_dimension_numbers<[1], [0], [0], [1], [0, 0, 1, 1], [], []>} : vector<2x64xf32>, vector<64x128xf32>, vector<2x128xf32> -> vector<2x128xf32>
    %200 = arith.addf %199, %4 : vector<2x128xf32>
    %201 = vector.extract_strided_slice %200 {offsets = [0, 0], sizes = [2, 32], strides = [1, 1]} : vector<2x128xf32> to vector<2x32xf32>
    %202 = arith.negf %201 : vector<2x32xf32>
    %203 = math.exp %202 : vector<2x32xf32>
    %cst_34 = arith.constant 1.000000e+00 : f32
    %204 = vector.broadcast %cst_34 : f32 to vector<2x32xf32>
    %205 = arith.addf %204, %203 : vector<2x32xf32>
    %206 = arith.divf %204, %205 : vector<2x32xf32>
    %207 = vector.extract_strided_slice %200 {offsets = [0, 32], sizes = [2, 32], strides = [1, 1]} : vector<2x128xf32> to vector<2x32xf32>
    %208 = arith.negf %207 : vector<2x32xf32>
    %209 = math.exp %208 : vector<2x32xf32>
    %cst_35 = arith.constant 1.000000e+00 : f32
    %210 = vector.broadcast %cst_35 : f32 to vector<2x32xf32>
    %211 = arith.addf %210, %209 : vector<2x32xf32>
    %212 = arith.divf %210, %211 : vector<2x32xf32>
    %213 = vector.extract_strided_slice %200 {offsets = [0, 64], sizes = [2, 32], strides = [1, 1]} : vector<2x128xf32> to vector<2x32xf32>
    %214 = vector.extract_strided_slice %200 {offsets = [0, 96], sizes = [2, 32], strides = [1, 1]} : vector<2x128xf32> to vector<2x32xf32>
    %215 = arith.mulf %206, %214 : vector<2x32xf32>
    %216 = arith.addf %213, %215 : vector<2x32xf32>
    %217 = math.tanh %216 : vector<2x32xf32>
    %cst_36 = arith.constant 1.000000e+00 : f32
    %218 = vector.broadcast %cst_36 : f32 to vector<2x32xf32>
    %219 = arith.subf %218, %212 : vector<2x32xf32>
    %220 = arith.mulf %219, %217 : vector<2x32xf32>
    %221 = arith.mulf %212, %168 : vector<2x32xf32>
    %222 = arith.addf %220, %221 : vector<2x32xf32>
    %223 = vector.extract_strided_slice %17 {offsets = [8, 0], sizes = [2, 128], strides = [1, 1]} : vector<16x128xf32> to vector<2x128xf32>
    %cst_37 = arith.constant dense<0.000000e+00> : vector<2x128xf32>
    %224 = tpu.matmul %197, %11, %cst_37 {dimension_numbers = #tpu.dot_dimension_numbers<[1], [0], [0], [1], [0, 0, 1, 1], [], []>} : vector<2x32xf32>, vector<32x128xf32>, vector<2x128xf32> -> vector<2x128xf32>
    %225 = vector.extract_strided_slice %223 {offsets = [0, 0], sizes = [2, 32], strides = [1, 1]} : vector<2x128xf32> to vector<2x32xf32>
    %226 = vector.extract_strided_slice %224 {offsets = [0, 0], sizes = [2, 32], strides = [1, 1]} : vector<2x128xf32> to vector<2x32xf32>
    %227 = arith.addf %225, %226 : vector<2x32xf32>
    %228 = arith.negf %227 : vector<2x32xf32>
    %229 = math.exp %228 : vector<2x32xf32>
    %cst_38 = arith.constant 1.000000e+00 : f32
    %230 = vector.broadcast %cst_38 : f32 to vector<2x32xf32>
    %231 = arith.addf %230, %229 : vector<2x32xf32>
    %232 = arith.divf %230, %231 : vector<2x32xf32>
    %233 = vector.extract_strided_slice %223 {offsets = [0, 32], sizes = [2, 32], strides = [1, 1]} : vector<2x128xf32> to vector<2x32xf32>
    %234 = vector.extract_strided_slice %224 {offsets = [0, 32], sizes = [2, 32], strides = [1, 1]} : vector<2x128xf32> to vector<2x32xf32>
    %235 = arith.addf %233, %234 : vector<2x32xf32>
    %236 = arith.negf %235 : vector<2x32xf32>
    %237 = math.exp %236 : vector<2x32xf32>
    %cst_39 = arith.constant 1.000000e+00 : f32
    %238 = vector.broadcast %cst_39 : f32 to vector<2x32xf32>
    %239 = arith.addf %238, %237 : vector<2x32xf32>
    %240 = arith.divf %238, %239 : vector<2x32xf32>
    %241 = vector.extract_strided_slice %223 {offsets = [0, 64], sizes = [2, 32], strides = [1, 1]} : vector<2x128xf32> to vector<2x32xf32>
    %242 = vector.extract_strided_slice %224 {offsets = [0, 64], sizes = [2, 32], strides = [1, 1]} : vector<2x128xf32> to vector<2x32xf32>
    %243 = arith.addf %242, %7 : vector<2x32xf32>
    %244 = arith.mulf %232, %243 : vector<2x32xf32>
    %245 = arith.addf %241, %244 : vector<2x32xf32>
    %246 = math.tanh %245 : vector<2x32xf32>
    %cst_40 = arith.constant 1.000000e+00 : f32
    %247 = vector.broadcast %cst_40 : f32 to vector<2x32xf32>
    %248 = arith.subf %247, %240 : vector<2x32xf32>
    %249 = arith.mulf %248, %246 : vector<2x32xf32>
    %250 = arith.mulf %240, %197 : vector<2x32xf32>
    %251 = arith.addf %249, %250 : vector<2x32xf32>
    %252 = tpu.concatenate %251, %222 in 1 : vector<2x32xf32>, vector<2x32xf32> -> vector<2x64xf32>
    %cst_41 = arith.constant dense<0.000000e+00> : vector<2x128xf32>
    %253 = tpu.matmul %252, %12, %cst_41 {dimension_numbers = #tpu.dot_dimension_numbers<[1], [0], [0], [1], [0, 0, 1, 1], [], []>} : vector<2x64xf32>, vector<64x128xf32>, vector<2x128xf32> -> vector<2x128xf32>
    %254 = arith.addf %253, %4 : vector<2x128xf32>
    %255 = vector.extract_strided_slice %254 {offsets = [0, 0], sizes = [2, 32], strides = [1, 1]} : vector<2x128xf32> to vector<2x32xf32>
    %256 = arith.negf %255 : vector<2x32xf32>
    %257 = math.exp %256 : vector<2x32xf32>
    %cst_42 = arith.constant 1.000000e+00 : f32
    %258 = vector.broadcast %cst_42 : f32 to vector<2x32xf32>
    %259 = arith.addf %258, %257 : vector<2x32xf32>
    %260 = arith.divf %258, %259 : vector<2x32xf32>
    %261 = vector.extract_strided_slice %254 {offsets = [0, 32], sizes = [2, 32], strides = [1, 1]} : vector<2x128xf32> to vector<2x32xf32>
    %262 = arith.negf %261 : vector<2x32xf32>
    %263 = math.exp %262 : vector<2x32xf32>
    %cst_43 = arith.constant 1.000000e+00 : f32
    %264 = vector.broadcast %cst_43 : f32 to vector<2x32xf32>
    %265 = arith.addf %264, %263 : vector<2x32xf32>
    %266 = arith.divf %264, %265 : vector<2x32xf32>
    %267 = vector.extract_strided_slice %254 {offsets = [0, 64], sizes = [2, 32], strides = [1, 1]} : vector<2x128xf32> to vector<2x32xf32>
    %268 = vector.extract_strided_slice %254 {offsets = [0, 96], sizes = [2, 32], strides = [1, 1]} : vector<2x128xf32> to vector<2x32xf32>
    %269 = arith.mulf %260, %268 : vector<2x32xf32>
    %270 = arith.addf %267, %269 : vector<2x32xf32>
    %271 = math.tanh %270 : vector<2x32xf32>
    %cst_44 = arith.constant 1.000000e+00 : f32
    %272 = vector.broadcast %cst_44 : f32 to vector<2x32xf32>
    %273 = arith.subf %272, %266 : vector<2x32xf32>
    %274 = arith.mulf %273, %271 : vector<2x32xf32>
    %275 = arith.mulf %266, %222 : vector<2x32xf32>
    %276 = arith.addf %274, %275 : vector<2x32xf32>
    %277 = vector.extract_strided_slice %17 {offsets = [10, 0], sizes = [2, 128], strides = [1, 1]} : vector<16x128xf32> to vector<2x128xf32>
    %cst_45 = arith.constant dense<0.000000e+00> : vector<2x128xf32>
    %278 = tpu.matmul %251, %11, %cst_45 {dimension_numbers = #tpu.dot_dimension_numbers<[1], [0], [0], [1], [0, 0, 1, 1], [], []>} : vector<2x32xf32>, vector<32x128xf32>, vector<2x128xf32> -> vector<2x128xf32>
    %279 = vector.extract_strided_slice %277 {offsets = [0, 0], sizes = [2, 32], strides = [1, 1]} : vector<2x128xf32> to vector<2x32xf32>
    %280 = vector.extract_strided_slice %278 {offsets = [0, 0], sizes = [2, 32], strides = [1, 1]} : vector<2x128xf32> to vector<2x32xf32>
    %281 = arith.addf %279, %280 : vector<2x32xf32>
    %282 = arith.negf %281 : vector<2x32xf32>
    %283 = math.exp %282 : vector<2x32xf32>
    %cst_46 = arith.constant 1.000000e+00 : f32
    %284 = vector.broadcast %cst_46 : f32 to vector<2x32xf32>
    %285 = arith.addf %284, %283 : vector<2x32xf32>
    %286 = arith.divf %284, %285 : vector<2x32xf32>
    %287 = vector.extract_strided_slice %277 {offsets = [0, 32], sizes = [2, 32], strides = [1, 1]} : vector<2x128xf32> to vector<2x32xf32>
    %288 = vector.extract_strided_slice %278 {offsets = [0, 32], sizes = [2, 32], strides = [1, 1]} : vector<2x128xf32> to vector<2x32xf32>
    %289 = arith.addf %287, %288 : vector<2x32xf32>
    %290 = arith.negf %289 : vector<2x32xf32>
    %291 = math.exp %290 : vector<2x32xf32>
    %cst_47 = arith.constant 1.000000e+00 : f32
    %292 = vector.broadcast %cst_47 : f32 to vector<2x32xf32>
    %293 = arith.addf %292, %291 : vector<2x32xf32>
    %294 = arith.divf %292, %293 : vector<2x32xf32>
    %295 = vector.extract_strided_slice %277 {offsets = [0, 64], sizes = [2, 32], strides = [1, 1]} : vector<2x128xf32> to vector<2x32xf32>
    %296 = vector.extract_strided_slice %278 {offsets = [0, 64], sizes = [2, 32], strides = [1, 1]} : vector<2x128xf32> to vector<2x32xf32>
    %297 = arith.addf %296, %7 : vector<2x32xf32>
    %298 = arith.mulf %286, %297 : vector<2x32xf32>
    %299 = arith.addf %295, %298 : vector<2x32xf32>
    %300 = math.tanh %299 : vector<2x32xf32>
    %cst_48 = arith.constant 1.000000e+00 : f32
    %301 = vector.broadcast %cst_48 : f32 to vector<2x32xf32>
    %302 = arith.subf %301, %294 : vector<2x32xf32>
    %303 = arith.mulf %302, %300 : vector<2x32xf32>
    %304 = arith.mulf %294, %251 : vector<2x32xf32>
    %305 = arith.addf %303, %304 : vector<2x32xf32>
    %306 = tpu.concatenate %305, %276 in 1 : vector<2x32xf32>, vector<2x32xf32> -> vector<2x64xf32>
    %cst_49 = arith.constant dense<0.000000e+00> : vector<2x128xf32>
    %307 = tpu.matmul %306, %12, %cst_49 {dimension_numbers = #tpu.dot_dimension_numbers<[1], [0], [0], [1], [0, 0, 1, 1], [], []>} : vector<2x64xf32>, vector<64x128xf32>, vector<2x128xf32> -> vector<2x128xf32>
    %308 = arith.addf %307, %4 : vector<2x128xf32>
    %309 = vector.extract_strided_slice %308 {offsets = [0, 0], sizes = [2, 32], strides = [1, 1]} : vector<2x128xf32> to vector<2x32xf32>
    %310 = arith.negf %309 : vector<2x32xf32>
    %311 = math.exp %310 : vector<2x32xf32>
    %cst_50 = arith.constant 1.000000e+00 : f32
    %312 = vector.broadcast %cst_50 : f32 to vector<2x32xf32>
    %313 = arith.addf %312, %311 : vector<2x32xf32>
    %314 = arith.divf %312, %313 : vector<2x32xf32>
    %315 = vector.extract_strided_slice %308 {offsets = [0, 32], sizes = [2, 32], strides = [1, 1]} : vector<2x128xf32> to vector<2x32xf32>
    %316 = arith.negf %315 : vector<2x32xf32>
    %317 = math.exp %316 : vector<2x32xf32>
    %cst_51 = arith.constant 1.000000e+00 : f32
    %318 = vector.broadcast %cst_51 : f32 to vector<2x32xf32>
    %319 = arith.addf %318, %317 : vector<2x32xf32>
    %320 = arith.divf %318, %319 : vector<2x32xf32>
    %321 = vector.extract_strided_slice %308 {offsets = [0, 64], sizes = [2, 32], strides = [1, 1]} : vector<2x128xf32> to vector<2x32xf32>
    %322 = vector.extract_strided_slice %308 {offsets = [0, 96], sizes = [2, 32], strides = [1, 1]} : vector<2x128xf32> to vector<2x32xf32>
    %323 = arith.mulf %314, %322 : vector<2x32xf32>
    %324 = arith.addf %321, %323 : vector<2x32xf32>
    %325 = math.tanh %324 : vector<2x32xf32>
    %cst_52 = arith.constant 1.000000e+00 : f32
    %326 = vector.broadcast %cst_52 : f32 to vector<2x32xf32>
    %327 = arith.subf %326, %320 : vector<2x32xf32>
    %328 = arith.mulf %327, %325 : vector<2x32xf32>
    %329 = arith.mulf %320, %276 : vector<2x32xf32>
    %330 = arith.addf %328, %329 : vector<2x32xf32>
    %331 = vector.extract_strided_slice %17 {offsets = [12, 0], sizes = [2, 128], strides = [1, 1]} : vector<16x128xf32> to vector<2x128xf32>
    %cst_53 = arith.constant dense<0.000000e+00> : vector<2x128xf32>
    %332 = tpu.matmul %305, %11, %cst_53 {dimension_numbers = #tpu.dot_dimension_numbers<[1], [0], [0], [1], [0, 0, 1, 1], [], []>} : vector<2x32xf32>, vector<32x128xf32>, vector<2x128xf32> -> vector<2x128xf32>
    %333 = vector.extract_strided_slice %331 {offsets = [0, 0], sizes = [2, 32], strides = [1, 1]} : vector<2x128xf32> to vector<2x32xf32>
    %334 = vector.extract_strided_slice %332 {offsets = [0, 0], sizes = [2, 32], strides = [1, 1]} : vector<2x128xf32> to vector<2x32xf32>
    %335 = arith.addf %333, %334 : vector<2x32xf32>
    %336 = arith.negf %335 : vector<2x32xf32>
    %337 = math.exp %336 : vector<2x32xf32>
    %cst_54 = arith.constant 1.000000e+00 : f32
    %338 = vector.broadcast %cst_54 : f32 to vector<2x32xf32>
    %339 = arith.addf %338, %337 : vector<2x32xf32>
    %340 = arith.divf %338, %339 : vector<2x32xf32>
    %341 = vector.extract_strided_slice %331 {offsets = [0, 32], sizes = [2, 32], strides = [1, 1]} : vector<2x128xf32> to vector<2x32xf32>
    %342 = vector.extract_strided_slice %332 {offsets = [0, 32], sizes = [2, 32], strides = [1, 1]} : vector<2x128xf32> to vector<2x32xf32>
    %343 = arith.addf %341, %342 : vector<2x32xf32>
    %344 = arith.negf %343 : vector<2x32xf32>
    %345 = math.exp %344 : vector<2x32xf32>
    %cst_55 = arith.constant 1.000000e+00 : f32
    %346 = vector.broadcast %cst_55 : f32 to vector<2x32xf32>
    %347 = arith.addf %346, %345 : vector<2x32xf32>
    %348 = arith.divf %346, %347 : vector<2x32xf32>
    %349 = vector.extract_strided_slice %331 {offsets = [0, 64], sizes = [2, 32], strides = [1, 1]} : vector<2x128xf32> to vector<2x32xf32>
    %350 = vector.extract_strided_slice %332 {offsets = [0, 64], sizes = [2, 32], strides = [1, 1]} : vector<2x128xf32> to vector<2x32xf32>
    %351 = arith.addf %350, %7 : vector<2x32xf32>
    %352 = arith.mulf %340, %351 : vector<2x32xf32>
    %353 = arith.addf %349, %352 : vector<2x32xf32>
    %354 = math.tanh %353 : vector<2x32xf32>
    %cst_56 = arith.constant 1.000000e+00 : f32
    %355 = vector.broadcast %cst_56 : f32 to vector<2x32xf32>
    %356 = arith.subf %355, %348 : vector<2x32xf32>
    %357 = arith.mulf %356, %354 : vector<2x32xf32>
    %358 = arith.mulf %348, %305 : vector<2x32xf32>
    %359 = arith.addf %357, %358 : vector<2x32xf32>
    %360 = tpu.concatenate %359, %330 in 1 : vector<2x32xf32>, vector<2x32xf32> -> vector<2x64xf32>
    %cst_57 = arith.constant dense<0.000000e+00> : vector<2x128xf32>
    %361 = tpu.matmul %360, %12, %cst_57 {dimension_numbers = #tpu.dot_dimension_numbers<[1], [0], [0], [1], [0, 0, 1, 1], [], []>} : vector<2x64xf32>, vector<64x128xf32>, vector<2x128xf32> -> vector<2x128xf32>
    %362 = arith.addf %361, %4 : vector<2x128xf32>
    %363 = vector.extract_strided_slice %362 {offsets = [0, 0], sizes = [2, 32], strides = [1, 1]} : vector<2x128xf32> to vector<2x32xf32>
    %364 = arith.negf %363 : vector<2x32xf32>
    %365 = math.exp %364 : vector<2x32xf32>
    %cst_58 = arith.constant 1.000000e+00 : f32
    %366 = vector.broadcast %cst_58 : f32 to vector<2x32xf32>
    %367 = arith.addf %366, %365 : vector<2x32xf32>
    %368 = arith.divf %366, %367 : vector<2x32xf32>
    %369 = vector.extract_strided_slice %362 {offsets = [0, 32], sizes = [2, 32], strides = [1, 1]} : vector<2x128xf32> to vector<2x32xf32>
    %370 = arith.negf %369 : vector<2x32xf32>
    %371 = math.exp %370 : vector<2x32xf32>
    %cst_59 = arith.constant 1.000000e+00 : f32
    %372 = vector.broadcast %cst_59 : f32 to vector<2x32xf32>
    %373 = arith.addf %372, %371 : vector<2x32xf32>
    %374 = arith.divf %372, %373 : vector<2x32xf32>
    %375 = vector.extract_strided_slice %362 {offsets = [0, 64], sizes = [2, 32], strides = [1, 1]} : vector<2x128xf32> to vector<2x32xf32>
    %376 = vector.extract_strided_slice %362 {offsets = [0, 96], sizes = [2, 32], strides = [1, 1]} : vector<2x128xf32> to vector<2x32xf32>
    %377 = arith.mulf %368, %376 : vector<2x32xf32>
    %378 = arith.addf %375, %377 : vector<2x32xf32>
    %379 = math.tanh %378 : vector<2x32xf32>
    %cst_60 = arith.constant 1.000000e+00 : f32
    %380 = vector.broadcast %cst_60 : f32 to vector<2x32xf32>
    %381 = arith.subf %380, %374 : vector<2x32xf32>
    %382 = arith.mulf %381, %379 : vector<2x32xf32>
    %383 = arith.mulf %374, %330 : vector<2x32xf32>
    %384 = arith.addf %382, %383 : vector<2x32xf32>
    %385 = vector.extract_strided_slice %17 {offsets = [14, 0], sizes = [2, 128], strides = [1, 1]} : vector<16x128xf32> to vector<2x128xf32>
    %cst_61 = arith.constant dense<0.000000e+00> : vector<2x128xf32>
    %386 = tpu.matmul %359, %11, %cst_61 {dimension_numbers = #tpu.dot_dimension_numbers<[1], [0], [0], [1], [0, 0, 1, 1], [], []>} : vector<2x32xf32>, vector<32x128xf32>, vector<2x128xf32> -> vector<2x128xf32>
    %387 = vector.extract_strided_slice %385 {offsets = [0, 0], sizes = [2, 32], strides = [1, 1]} : vector<2x128xf32> to vector<2x32xf32>
    %388 = vector.extract_strided_slice %386 {offsets = [0, 0], sizes = [2, 32], strides = [1, 1]} : vector<2x128xf32> to vector<2x32xf32>
    %389 = arith.addf %387, %388 : vector<2x32xf32>
    %390 = arith.negf %389 : vector<2x32xf32>
    %391 = math.exp %390 : vector<2x32xf32>
    %cst_62 = arith.constant 1.000000e+00 : f32
    %392 = vector.broadcast %cst_62 : f32 to vector<2x32xf32>
    %393 = arith.addf %392, %391 : vector<2x32xf32>
    %394 = arith.divf %392, %393 : vector<2x32xf32>
    %395 = vector.extract_strided_slice %385 {offsets = [0, 32], sizes = [2, 32], strides = [1, 1]} : vector<2x128xf32> to vector<2x32xf32>
    %396 = vector.extract_strided_slice %386 {offsets = [0, 32], sizes = [2, 32], strides = [1, 1]} : vector<2x128xf32> to vector<2x32xf32>
    %397 = arith.addf %395, %396 : vector<2x32xf32>
    %398 = arith.negf %397 : vector<2x32xf32>
    %399 = math.exp %398 : vector<2x32xf32>
    %cst_63 = arith.constant 1.000000e+00 : f32
    %400 = vector.broadcast %cst_63 : f32 to vector<2x32xf32>
    %401 = arith.addf %400, %399 : vector<2x32xf32>
    %402 = arith.divf %400, %401 : vector<2x32xf32>
    %403 = vector.extract_strided_slice %385 {offsets = [0, 64], sizes = [2, 32], strides = [1, 1]} : vector<2x128xf32> to vector<2x32xf32>
    %404 = vector.extract_strided_slice %386 {offsets = [0, 64], sizes = [2, 32], strides = [1, 1]} : vector<2x128xf32> to vector<2x32xf32>
    %405 = arith.addf %404, %7 : vector<2x32xf32>
    %406 = arith.mulf %394, %405 : vector<2x32xf32>
    %407 = arith.addf %403, %406 : vector<2x32xf32>
    %408 = math.tanh %407 : vector<2x32xf32>
    %cst_64 = arith.constant 1.000000e+00 : f32
    %409 = vector.broadcast %cst_64 : f32 to vector<2x32xf32>
    %410 = arith.subf %409, %402 : vector<2x32xf32>
    %411 = arith.mulf %410, %408 : vector<2x32xf32>
    %412 = arith.mulf %402, %359 : vector<2x32xf32>
    %413 = arith.addf %411, %412 : vector<2x32xf32>
    %414 = tpu.concatenate %413, %384 in 1 : vector<2x32xf32>, vector<2x32xf32> -> vector<2x64xf32>
    %cst_65 = arith.constant dense<0.000000e+00> : vector<2x128xf32>
    %415 = tpu.matmul %414, %12, %cst_65 {dimension_numbers = #tpu.dot_dimension_numbers<[1], [0], [0], [1], [0, 0, 1, 1], [], []>} : vector<2x64xf32>, vector<64x128xf32>, vector<2x128xf32> -> vector<2x128xf32>
    %416 = arith.addf %415, %4 : vector<2x128xf32>
    %417 = vector.extract_strided_slice %416 {offsets = [0, 0], sizes = [2, 32], strides = [1, 1]} : vector<2x128xf32> to vector<2x32xf32>
    %418 = arith.negf %417 : vector<2x32xf32>
    %419 = math.exp %418 : vector<2x32xf32>
    %cst_66 = arith.constant 1.000000e+00 : f32
    %420 = vector.broadcast %cst_66 : f32 to vector<2x32xf32>
    %421 = arith.addf %420, %419 : vector<2x32xf32>
    %422 = arith.divf %420, %421 : vector<2x32xf32>
    %423 = vector.extract_strided_slice %416 {offsets = [0, 32], sizes = [2, 32], strides = [1, 1]} : vector<2x128xf32> to vector<2x32xf32>
    %424 = arith.negf %423 : vector<2x32xf32>
    %425 = math.exp %424 : vector<2x32xf32>
    %cst_67 = arith.constant 1.000000e+00 : f32
    %426 = vector.broadcast %cst_67 : f32 to vector<2x32xf32>
    %427 = arith.addf %426, %425 : vector<2x32xf32>
    %428 = arith.divf %426, %427 : vector<2x32xf32>
    %429 = vector.extract_strided_slice %416 {offsets = [0, 64], sizes = [2, 32], strides = [1, 1]} : vector<2x128xf32> to vector<2x32xf32>
    %430 = vector.extract_strided_slice %416 {offsets = [0, 96], sizes = [2, 32], strides = [1, 1]} : vector<2x128xf32> to vector<2x32xf32>
    %431 = arith.mulf %422, %430 : vector<2x32xf32>
    %432 = arith.addf %429, %431 : vector<2x32xf32>
    %433 = math.tanh %432 : vector<2x32xf32>
    %cst_68 = arith.constant 1.000000e+00 : f32
    %434 = vector.broadcast %cst_68 : f32 to vector<2x32xf32>
    %435 = arith.subf %434, %428 : vector<2x32xf32>
    %436 = arith.mulf %435, %433 : vector<2x32xf32>
    %437 = arith.mulf %428, %384 : vector<2x32xf32>
    %438 = arith.addf %436, %437 : vector<2x32xf32>
    %cst_69 = arith.constant dense<0.000000e+00> : vector<32xf32>
    %439 = vector.multi_reduction <add>, %438, %cst_69 [0] : vector<2x32xf32> to vector<32xf32>
    %440 = vector.shape_cast %439 : vector<32xf32> to vector<1x32xf32>
    %cst_70 = arith.constant 2.000000e+00 : f32
    %441 = vector.broadcast %cst_70 : f32 to vector<1x32xf32>
    %442 = arith.divf %440, %441 : vector<1x32xf32>
    %443 = vector.broadcast %442 : vector<1x32xf32> to vector<2x32xf32>
    %444 = arith.subf %438, %443 : vector<2x32xf32>
    %445 = arith.mulf %444, %444 : vector<2x32xf32>
    %cst_71 = arith.constant dense<0.000000e+00> : vector<32xf32>
    %446 = vector.multi_reduction <add>, %445, %cst_71 [0] : vector<2x32xf32> to vector<32xf32>
    %447 = vector.shape_cast %446 : vector<32xf32> to vector<1x32xf32>
    %cst_72 = arith.constant 2.000000e+00 : f32
    %448 = vector.broadcast %cst_72 : f32 to vector<1x32xf32>
    %449 = arith.divf %447, %448 : vector<1x32xf32>
    %cst_73 = arith.constant 9.99999974E-6 : f32
    %450 = vector.broadcast %cst_73 : f32 to vector<1x32xf32>
    %451 = arith.addf %449, %450 : vector<1x32xf32>
    %452 = math.rsqrt %451 : vector<1x32xf32>
    %453 = vector.broadcast %452 : vector<1x32xf32> to vector<2x32xf32>
    %454 = arith.mulf %444, %453 : vector<2x32xf32>
    %455 = vector.broadcast %8 : vector<1x32xf32> to vector<2x32xf32>
    %456 = arith.mulf %454, %455 : vector<2x32xf32>
    %457 = vector.broadcast %9 : vector<1x32xf32> to vector<2x32xf32>
    %458 = arith.addf %456, %457 : vector<2x32xf32>
    %cst_74 = arith.constant 0.000000e+00 : f32
    %459 = vector.broadcast %cst_74 : f32 to vector<2x32xf32>
    %460 = arith.maximumf %458, %459 : vector<2x32xf32>
    %c408 = arith.constant 408 : index
    %c0_75 = arith.constant 0 : index
    %461 = vector.load %arg1[%c408, %c0_75] : memref<448x128xf32, #tpu.memory_space<vmem>>, vector<32x128xf32>
    %cst_76 = arith.constant dense<0.000000e+00> : vector<2x128xf32>
    %462 = tpu.matmul %460, %461, %cst_76 {dimension_numbers = #tpu.dot_dimension_numbers<[1], [0], [0], [1], [0, 0, 1, 1], [], []>} : vector<2x32xf32>, vector<32x128xf32>, vector<2x128xf32> -> vector<2x128xf32>
    %463 = vector.broadcast %10 : vector<1x128xf32> to vector<2x128xf32>
    %464 = arith.addf %462, %463 : vector<2x128xf32>
    %c0_77 = arith.constant 0 : index
    %c0_78 = arith.constant 0 : index
    %465 = vector.load %arg2[%c0_77, %c0_78] : memref<2x128xf32, #tpu.memory_space<vmem>>, vector<2x128xf32>
    tpu.vector_store %arg2[%c0_77, %c0_78], %464 {strides = array<i32>} : memref<2x128xf32, #tpu.memory_space<vmem>>, vector<2x128xf32>,
    return
  }
}

</mosaic_0001>

<llo_original>
// kernel: tpu_custom_call.1
$region0: #{tpu_custom_call.1}
  #allocation0 [shape = 'u32[]', space=smem, size = 0x4, offset = 0x4, fixed_abs, tag = 'smem constant byte address 0x4 - core index']
  #allocation1 [shape = 'u32[72,128]{1,0:T(1,128)}', space=vmem, size = 0x9000, scoped, tag = 'internal scratch']
  %s0 = inlined_call_operand.hbm [shape: f32[16,310], index: 0, kind: input, shape index: {}]
  %s1 = inlined_call_operand.hbm [shape: f32[448,128], index: 1, kind: input, shape index: {}]
  %s2 = inlined_call_operand.hbm [shape: f32[2,128], index: 2, kind: output, shape index: {}]
  %s3 = sld [smem:[#allocation0]]
  $region26: #{tpu_custom_call.1} parent=0
    _
  %s5 = ssub.s32 1, %s3
  %s6 = scalar_select 0, %s5, %s3
  $region1: #{tpu_custom_call.1} parent=0
    #allocation2 [shape = 'u8[24576]{0}', space=vmem, size = 0x6000, scoped, tag = 'input window, operand 0, single buffered']
    #allocation3 [shape = 's32[1]{0}', space=sflag, size = 0x4, scoped, tag = 'scoped memory for tpu_custom_call.1']
    #allocation4 [shape = 's32[1]{0}', space=sflag, size = 0x4, scoped, tag = 'scoped memory for tpu_custom_call.1']
    #allocation5 [shape = 'u8[229376]{0}', space=vmem, size = 0x38000, scoped, tag = 'input window, operand 1, single buffered']
    #allocation6 [shape = 's32[1]{0}', space=sflag, size = 0x4, scoped, tag = 'scoped memory for tpu_custom_call.1']
    #allocation7 [shape = 'u8[1024]{0}', space=vmem, size = 0x400, scoped, tag = 'output window, operand 0, single buffered']
    %7 = vsyncpa [#allocation3], 0
    %8 = vsyncpa [#allocation6], 0
    %9 = vsyncpa [#allocation4], 0
    // Predicated region
    $region2: #{tpu_custom_call.1} parent=1 // pred_check
      _
    $region3: #{tpu_custom_call.1} parent=1 // pred_check_branch
      %11 = sbr.rel (0) target = $region5
    $region4: #{tpu_custom_call.1} parent=1 // pred_region
      %13 = vsyncadd [#allocation3], 0
      %s14 = sshll.u32 %s0, 4
      %s15 = int_to_ptr.hbm [resolvable:$true] %s14
      %s16 = sshll.u32 [#allocation2], 4
      %s17 = int_to_ptr.vmem [resolvable:$true] %s16
      %22 = dma.hbm_to_vmem [thread:$0]  %s15, 768, %s17, [#allocation3], 384, 384, 24
    $region5: #{tpu_custom_call.1} parent=1 // pred_fallthru
      _
    // Predicated region
    $region6: #{tpu_custom_call.1} parent=1 // pred_check
      _
    $region7: #{tpu_custom_call.1} parent=1 // pred_check_branch
      %24 = sbr.rel (0) target = $region9
    $region8: #{tpu_custom_call.1} parent=1 // pred_region
      %26 = vsyncadd [#allocation6], 0
      %s27 = sshll.u32 %s1, 4
      %s28 = int_to_ptr.hbm [resolvable:$true] %s27
      %s29 = sshll.u32 [#allocation5], 4
      %s30 = int_to_ptr.vmem [resolvable:$true] %s29
      %35 = dma.hbm_to_vmem [thread:$0]  %s28, 7168, %s30, [#allocation6], 128, 128, 8
    $region9: #{tpu_custom_call.1} parent=1 // pred_fallthru
      _
    // Predicated region
    $region10: #{tpu_custom_call.1} parent=1 // pred_check
      _
    $region11: #{tpu_custom_call.1} parent=1 // pred_check_branch
      %37 = sbr.rel (0) target = $region13
    $region12: #{tpu_custom_call.1} parent=1 // pred_region
      %39 = dma.done [#allocation3], 768
    $region13: #{tpu_custom_call.1} parent=1 // pred_fallthru
      _
    // Predicated region
    $region14: #{tpu_custom_call.1} parent=1 // pred_check
      _
    $region15: #{tpu_custom_call.1} parent=1 // pred_check_branch
      %41 = sbr.rel (0) target = $region17
    $region16: #{tpu_custom_call.1} parent=1 // pred_region
      %43 = dma.done [#allocation6], 7168
    $region17: #{tpu_custom_call.1} parent=1 // pred_fallthru
      _
    %v44 = vld [vmem:[#allocation5 + $0x1b8] sm:$0xff]
    %v45 = vperm.slane %v44, 1
    %v46 = vperm.slane %v44, 2
    %v47 = vld [vmem:[#allocation5 + $0x138] sm:$0xff]
    %v48 = vld [vmem:[#allocation5 + $0x140] sm:$0xff]
    %v49 = vld [vmem:[#allocation5 + $0x148] sm:$0xff]
    %v50 = vld [vmem:[#allocation5 + $0x150] sm:$0xff]
    %v51 = vld [vmem:[#allocation5 + $0x158] sm:$0xff]
    %v52 = vld [vmem:[#allocation5 + $0x160] sm:$0xff]
    %v53 = vld [vmem:[#allocation5 + $0x168] sm:$0xff]
    %v54 = vld [vmem:[#allocation5 + $0x170] sm:$0xff]
    %v55 = vld [vmem:[#allocation5 + $0x178] sm:$0xff]
    %v56 = vld [vmem:[#allocation5 + $0x180] sm:$0xff]
    %v57 = vld [vmem:[#allocation5 + $0x188] sm:$0xff]
    %v58 = vld [vmem:[#allocation5 + $0x190] sm:$0xff]
    %v59 = vld [vmem:[#allocation2] sm:$0xff]
    %v60 = vld [vmem:[#allocation2 + $0x8] sm:$0xff]
    %v61 = vld [vmem:[#allocation2 + $0x10] sm:$0xff]
    %v62 = vld [vmem:[#allocation2 + $0x18] sm:$0xff]
    %v63 = vld [vmem:[#allocation2 + $0x20] sm:$0xff]
    %v64 = vld [vmem:[#allocation2 + $0x28] sm:$0xff]
    %v65 = vld [vmem:[#allocation5] sm:$0xff]
    %v66 = vld [vmem:[#allocation5 + $0x8] sm:$0xff]
    %v67 = vld [vmem:[#allocation5 + $0x10] sm:$0xff]
    %v68 = vld [vmem:[#allocation5 + $0x18] sm:$0xff]
    %v69 = vld [vmem:[#allocation5 + $0x20] sm:$0xff]
    %v70 = vld [vmem:[#allocation5 + $0x28] sm:$0xff]
    %v71 = vld [vmem:[#allocation5 + $0x30] sm:$0xff]
    %v72 = vld [vmem:[#allocation5 + $0x38] sm:$0xff]
    %v73 = vld [vmem:[#allocation5 + $0x40] sm:$0xff]
    %v74 = vld [vmem:[#allocation5 + $0x48] sm:$0xff]
    %v75 = vld [vmem:[#allocation5 + $0x50] sm:$0xff]
    %v76 = vld [vmem:[#allocation5 + $0x58] sm:$0xff]
    %v77 = vld [vmem:[#allocation5 + $0x60] sm:$0xff]
    %v78 = vld [vmem:[#allocation5 + $0x68] sm:$0xff]
    %v79 = vld [vmem:[#allocation5 + $0x70] sm:$0xff]
    %v80 = vld [vmem:[#allocation5 + $0x78] sm:$0xff]
    %v81 = vld [vmem:[#allocation5 + $0x80] sm:$0xff]
    %v82 = vld [vmem:[#allocation5 + $0x88] sm:$0xff]
    %v83 = vld [vmem:[#allocation5 + $0x90] sm:$0xff]
    %v84 = vld [vmem:[#allocation5 + $0x98] sm:$0xff]
    %v85 = vld [vmem:[#allocation5 + $0xa0] sm:$0xff]
    %v86 = vld [vmem:[#allocation5 + $0xa8] sm:$0xff]
    %v87 = vld [vmem:[#allocation5 + $0xb0] sm:$0xff]
    %v88 = vld [vmem:[#allocation5 + $0xb8] sm:$0xff]
    %v89 = vld [vmem:[#allocation5 + $0xc0] sm:$0xff]
    %v90 = vld [vmem:[#allocation5 + $0xc8] sm:$0xff]
    %v91 = vld [vmem:[#allocation5 + $0xd0] sm:$0xff]
    %v92 = vld [vmem:[#allocation5 + $0xd8] sm:$0xff]
    %v93 = vld [vmem:[#allocation5 + $0xe0] sm:$0xff]
    %v94 = vld [vmem:[#allocation5 + $0xe8] sm:$0xff]
    %v95 = vld [vmem:[#allocation5 + $0xf0] sm:$0xff]
    %v96 = vld [vmem:[#allocation5 + $0xf8] sm:$0xff]
    %v97 = vld [vmem:[#allocation5 + $0x100] sm:$0xff]
    %v98 = vld [vmem:[#allocation5 + $0x108] sm:$0xff]
    %v99 = vld [vmem:[#allocation5 + $0x110] sm:$0xff]
    %v100 = vld [vmem:[#allocation5 + $0x118] sm:$0xff]
    %v101 = vld [vmem:[#allocation5 + $0x120] sm:$0xff]
    %v102 = vld [vmem:[#allocation5 + $0x128] sm:$0xff]
    %v103 = vld [vmem:[#allocation5 + $0x130] sm:$0x3f]
    %v104 = vperm.slane %v44, 0
    %vm105 = vcmask 441344
    %v107 = vsel %vm105, %v61, 0
    %v110 = vsel %vm105, %v64, 0
    %vm112 = vcmask 1045504
    %v114 = vsel %vm112, %v103, 0
    %116 = vmatpush.msra.mxu0 %v80
    %117 = vmatpush.msra.mxu0 %v79
    %118 = vmatpush.msra.mxu0 %v78
    %119 = vmatpush.msra.mxu0 %v77
    %120 = vmatpush.msra.mxu0 %v76
    %121 = vmatpush.msra.mxu0 %v75
    %122 = vmatpush.msra.mxu0 %v74
    %123 = vmatpush.msra.mxu0 %v73
    %124 = vmatpush.msra.mxu0 %v72
    %125 = vmatpush.msra.mxu0 %v71
    %126 = vmatpush.msra.mxu0 %v70
    %127 = vmatpush.msra.mxu0 %v69
    %128 = vmatpush.msra.mxu0 %v68
    %129 = vmatpush.msra.mxu0 %v67
    %130 = vmatpush.msra.mxu0 %v66
    %131 = vmatpush.msra.mxu0 %v65
    %132 = vmatmul.f32.gmra.mxu0 %v59
    %v133 = vpop.f32.mrf.mxu0
    %v134 = vadd.f32 %v104, %v133
    %135 = vmatmul.f32.gmra.mxu0 %v62
    %v136 = vpop.f32.mrf.mxu0
    %v137 = vadd.f32 %v104, %v136
    %138 = vdwg.mxu0
    %139 = vmatpush.msra.mxu0 %v96
    %140 = vmatpush.msra.mxu0 %v95
    %141 = vmatpush.msra.mxu0 %v94
    %142 = vmatpush.msra.mxu0 %v93
    %143 = vmatpush.msra.mxu0 %v92
    %144 = vmatpush.msra.mxu0 %v91
    %145 = vmatpush.msra.mxu0 %v90
    %146 = vmatpush.msra.mxu0 %v89
    %147 = vmatpush.msra.mxu0 %v88
    %148 = vmatpush.msra.mxu0 %v87
    %149 = vmatpush.msra.mxu0 %v86
    %150 = vmatpush.msra.mxu0 %v85
    %151 = vmatpush.msra.mxu0 %v84
    %152 = vmatpush.msra.mxu0 %v83
    %153 = vmatpush.msra.mxu0 %v82
    %154 = vmatpush.msra.mxu0 %v81
    %155 = vmatmul.f32.gmra.mxu0 %v60
    %v156 = vpop.f32.mrf.mxu0
    %v157 = vadd.f32 %v134, %v156
    %158 = vmatmul.f32.gmra.mxu0 %v63
    %v159 = vpop.f32.mrf.mxu0
    %v160 = vadd.f32 %v137, %v159
    %161 = vdwg.mxu0
    %162 = vmatpush.msra.mxu0 0.0
    %163 = vmatpush.msra.mxu0 0.0
    %164 = vmatpush.msra.mxu0 0.0
    %165 = vmatpush.msra.mxu0 0.0
    %166 = vmatpush.msra.mxu0 0.0
    %167 = vmatpush.msra.mxu0 0.0
    %168 = vmatpush.msra.mxu0 0.0
    %169 = vmatpush.msra.mxu0 0.0
    %170 = vmatpush.msra.mxu0 0.0
    %171 = vmatpush.msra.mxu0 %v114
    %172 = vmatpush.msra.mxu0 %v102
    %173 = vmatpush.msra.mxu0 %v101
    %174 = vmatpush.msra.mxu0 %v100
    %175 = vmatpush.msra.mxu0 %v99
    %176 = vmatpush.msra.mxu0 %v98
    %177 = vmatpush.msra.mxu0 %v97
    %178 = vmatmul.f32.gmra.mxu0 %v107
    %v179 = vpop.f32.mrf.mxu0
    %v180 = vadd.f32 %v157, %v179
    %181 = vmatmul.f32.gmra.mxu0 %v110
    %v182 = vpop.f32.mrf.mxu0
    %v183 = vadd.f32 %v160, %v182
    %184 = vdwg.mxu0
    %v185 = vxor.u32 %v180, 2147483648
    %v186 = vmul.f32 %v185, 1.442695
    %v187 = vpow.pop %v186
    %v188 = vadd.f32 %v187, 1.0
    %v189 = vrcp.pop %v188
    %v190 = vmul.f32 %v188, %v189
    %v191 = vsub.f32 1.0, %v190
    %v192 = vmul.f32 %v189, %v191
    %v193 = vadd.f32 %v189, %v192
    %vm194 = vweird.f32 %v188
    %vm195 = vweird.f32 %v189
    %vm196 = vmor %vm194, %vm195
    %v197 = vsel %vm196, %v189, %v193
    %v198 = vand.u32 2147483647, %v188
    %vm199 = vcmp.eq.f32.partialorder %v198, 8.507059e+37
    %v200 = vand.u32 %v188, 2147483648
    %v201 = vor.u32 1.1754944e-38, %v200
    %v202 = vsel %vm199, %v201, %v197
    %v203 = vmul.f32 1.0, %v202
    %v204 = vmul.f32 %v203, %v46
    %206 = vrot.lane.b32.xlu0 %v204, 64
    %v207 = vpop.permute.xlu0 %206
    %v209 = vadd.f32 %v180, %v207
    %v210 = vtanh.pop %v209
    %v211 = vsub.f32 1.0, %v203
    %213 = vrot.lane.b32.xlu0 %v210, 96
    %v214 = vpop.permute.xlu0 %213
    %v216 = vmul.f32 %v211, %v214
    %218 = vrot.lane.b32.xlu0 %v216, 96
    %v219 = vpop.permute.xlu0 %218
    %vm220 = vcmask 261120
    %v221 = vsel %vm220, %v219, 0
    %223 = vmatpush.msra.mxu0 0.0
    %224 = vmatpush.msra.mxu0 0.0
    %225 = vmatpush.msra.mxu0 0.0
    %226 = vmatpush.msra.mxu0 0.0
    %227 = vmatpush.msra.mxu0 0.0
    %228 = vmatpush.msra.mxu0 0.0
    %229 = vmatpush.msra.mxu0 0.0
    %230 = vmatpush.msra.mxu0 0.0
    %231 = vmatpush.msra.mxu0 0.0
    %232 = vmatpush.msra.mxu0 0.0
    %233 = vmatpush.msra.mxu0 0.0
    %234 = vmatpush.msra.mxu0 0.0
    %235 = vmatpush.msra.mxu0 %v54
    %236 = vmatpush.msra.mxu0 %v53
    %237 = vmatpush.msra.mxu0 %v52
    %238 = vmatpush.msra.mxu0 %v51
    %239 = vmatmul.f32.gmra.mxu0 %v221
    %v240 = vpop.f32.mrf.mxu0
    %v241 = vadd.f32 %v45, %v240
    %242 = vdwg.mxu0
    %v243 = vxor.u32 %v241, 2147483648
    %v244 = vmul.f32 %v243, 1.442695
    %v245 = vpow.pop %v244
    %v246 = vadd.f32 %v245, 1.0
    %v247 = vrcp.pop %v246
    %v248 = vmul.f32 %v246, %v247
    %v249 = vsub.f32 1.0, %v248
    %v250 = vmul.f32 %v247, %v249
    %v251 = vadd.f32 %v247, %v250
    %vm252 = vweird.f32 %v246
    %vm253 = vweird.f32 %v247
    %vm254 = vmor %vm252, %vm253
    %v255 = vsel %vm254, %v247, %v251
    %v256 = vand.u32 2147483647, %v246
    %vm257 = vcmp.eq.f32.partialorder %v256, 8.507059e+37
    %v258 = vand.u32 %v246, 2147483648
    %v259 = vor.u32 1.1754944e-38, %v258
    %v260 = vsel %vm257, %v259, %v255
    %v261 = vmul.f32 1.0, %v260
    %263 = vrot.lane.b32.xlu0 %v241, 32
    %v264 = vpop.permute.xlu0 %263
    %v266 = vmul.f32 %v261, %v264
    %268 = vrot.lane.b32.xlu0 %v266, 64
    %v269 = vpop.permute.xlu0 %268
    %v271 = vadd.f32 %v241, %v269
    %v272 = vtanh.pop %v271
    %v273 = vsub.f32 1.0, %v261
    %275 = vrot.lane.b32.xlu0 %v272, 96
    %v276 = vpop.permute.xlu0 %275
    %v278 = vmul.f32 %v273, %v276
    %279 = vmatpush.msra.mxu0 0.0
    %280 = vmatpush.msra.mxu0 0.0
    %281 = vmatpush.msra.mxu0 0.0
    %282 = vmatpush.msra.mxu0 0.0
    %283 = vmatpush.msra.mxu0 0.0
    %284 = vmatpush.msra.mxu0 0.0
    %285 = vmatpush.msra.mxu0 0.0
    %286 = vmatpush.msra.mxu0 0.0
    %287 = vmatpush.msra.mxu0 0.0
    %288 = vmatpush.msra.mxu0 0.0
    %289 = vmatpush.msra.mxu0 0.0
    %290 = vmatpush.msra.mxu0 0.0
    %291 = vmatpush.msra.mxu0 %v50
    %292 = vmatpush.msra.mxu0 %v49
    %293 = vmatpush.msra.mxu0 %v48
    %294 = vmatpush.msra.mxu0 %v47
    %295 = vmatmul.f32.gmra.mxu0 %v221
    %v296 = vpop.f32.mrf.mxu0
    %v297 = vadd.f32 0.0, %v296
    %298 = vdwg.mxu0
    %v300 = vrot.slane %v297, 6
    %v302 = vadd.f32 %v180, %v300
    %v303 = vxor.u32 %v302, 2147483648
    %v304 = vmul.f32 %v303, 1.442695
    %v305 = vpow.pop %v304
    %v306 = vadd.f32 %v305, 1.0
    %v307 = vrcp.pop %v306
    %v308 = vmul.f32 %v306, %v307
    %v309 = vsub.f32 1.0, %v308
    %v310 = vmul.f32 %v307, %v309
    %v311 = vadd.f32 %v307, %v310
    %vm312 = vweird.f32 %v306
    %vm313 = vweird.f32 %v307
    %vm314 = vmor %vm312, %vm313
    %v315 = vsel %vm314, %v307, %v311
    %v316 = vand.u32 2147483647, %v306
    %vm317 = vcmp.eq.f32.partialorder %v316, 8.507059e+37
    %v318 = vand.u32 %v306, 2147483648
    %v319 = vor.u32 1.1754944e-38, %v318
    %v320 = vsel %vm317, %v319, %v315
    %v321 = vmul.f32 1.0, %v320
    %323 = vrot.lane.b32.xlu0 %v46, 64
    %v324 = vpop.permute.xlu0 %323
    %v326 = vadd.f32 %v297, %v324
    %v328 = vrot.slane %v326, 6
    %329 = vrot.lane.b32.xlu0 %v328, 64
    %v330 = vpop.permute.xlu0 %329
    %v332 = vmul.f32 %v321, %v330
    %334 = vrot.lane.b32.xlu0 %v332, 64
    %v335 = vpop.permute.xlu0 %334
    %v337 = vadd.f32 %v180, %v335
    %v338 = vtanh.pop %v337
    %v339 = vsub.f32 1.0, %v321
    %341 = vrot.lane.b32.xlu0 %v338, 96
    %v342 = vpop.permute.xlu0 %341
    %v344 = vmul.f32 %v339, %v342
    %v345 = vrot.slane %v216, 6
    %v347 = vmul.f32 %v321, %v345
    %v348 = vadd.f32 %v344, %v347
    %350 = vrot.lane.b32.xlu0 %v348, 96
    %v351 = vpop.permute.xlu0 %350
    %v354 = vrot.slane %v278, 6
    %v356 = vsel %vm220, %v351, %v354
    %v358 = vrot.slane %v356, 2
    %vm359 = vcmask 523264
    %v360 = vsel %vm359, %v358, 0
    %362 = vmatpush.msra.mxu0 0.0
    %363 = vmatpush.msra.mxu0 0.0
    %364 = vmatpush.msra.mxu0 0.0
    %365 = vmatpush.msra.mxu0 0.0
    %366 = vmatpush.msra.mxu0 0.0
    %367 = vmatpush.msra.mxu0 0.0
    %368 = vmatpush.msra.mxu0 0.0
    %369 = vmatpush.msra.mxu0 0.0
    %370 = vmatpush.msra.mxu0 %v58
    %371 = vmatpush.msra.mxu0 %v57
    %372 = vmatpush.msra.mxu0 %v56
    %373 = vmatpush.msra.mxu0 %v55
    %374 = vmatpush.msra.mxu0 %v54
    %375 = vmatpush.msra.mxu0 %v53
    %376 = vmatpush.msra.mxu0 %v52
    %377 = vmatpush.msra.mxu0 %v51
    %378 = vmatmul.f32.gmra.mxu0 %v360
    %v379 = vpop.f32.mrf.mxu0
    %v380 = vadd.f32 %v45, %v379
    %381 = vdwg.mxu0
    %v382 = vxor.u32 %v380, 2147483648
    %v383 = vmul.f32 %v382, 1.442695
    %v384 = vpow.pop %v383
    %v385 = vadd.f32 %v384, 1.0
    %v386 = vrcp.pop %v385
    %v387 = vmul.f32 %v385, %v386
    %v388 = vsub.f32 1.0, %v387
    %v389 = vmul.f32 %v386, %v388
    %v390 = vadd.f32 %v386, %v389
    %vm391 = vweird.f32 %v385
    %vm392 = vweird.f32 %v386
    %vm393 = vmor %vm391, %vm392
    %v394 = vsel %vm393, %v386, %v390
    %v395 = vand.u32 2147483647, %v385
    %vm396 = vcmp.eq.f32.partialorder %v395, 8.507059e+37
    %v397 = vand.u32 %v385, 2147483648
    %v398 = vor.u32 1.1754944e-38, %v397
    %v399 = vsel %vm396, %v398, %v394
    %v400 = vmul.f32 1.0, %v399
    %402 = vrot.lane.b32.xlu0 %v380, 32
    %v403 = vpop.permute.xlu0 %402
    %v405 = vmul.f32 %v400, %v403
    %407 = vrot.lane.b32.xlu0 %v405, 64
    %v408 = vpop.permute.xlu0 %407
    %v410 = vadd.f32 %v380, %v408
    %v411 = vtanh.pop %v410
    %v412 = vsub.f32 1.0, %v400
    %414 = vrot.lane.b32.xlu0 %v411, 96
    %v415 = vpop.permute.xlu0 %414
    %v417 = vmul.f32 %v412, %v415
    %v418 = vmul.f32 %v400, %v278
    %v419 = vadd.f32 %v417, %v418
    %v420 = vrot.slane %v348, 2
    %421 = vrot.lane.b32.xlu0 %v420, 96
    %v422 = vpop.permute.xlu0 %421
    %v423 = vsel %vm220, %v422, 0
    %425 = vmatpush.msra.mxu0 0.0
    %426 = vmatpush.msra.mxu0 0.0
    %427 = vmatpush.msra.mxu0 0.0
    %428 = vmatpush.msra.mxu0 0.0
    %429 = vmatpush.msra.mxu0 0.0
    %430 = vmatpush.msra.mxu0 0.0
    %431 = vmatpush.msra.mxu0 0.0
    %432 = vmatpush.msra.mxu0 0.0
    %433 = vmatpush.msra.mxu0 0.0
    %434 = vmatpush.msra.mxu0 0.0
    %435 = vmatpush.msra.mxu0 0.0
    %436 = vmatpush.msra.mxu0 0.0
    %437 = vmatpush.msra.mxu0 %v50
    %438 = vmatpush.msra.mxu0 %v49
    %439 = vmatpush.msra.mxu0 %v48
    %440 = vmatpush.msra.mxu0 %v47
    %441 = vmatmul.f32.gmra.mxu0 %v423
    %v442 = vpop.f32.mrf.mxu0
    %v443 = vadd.f32 0.0, %v442
    %444 = vdwg.mxu0
    %v446 = vrot.slane %v443, 4
    %v448 = vadd.f32 %v180, %v446
    %v449 = vxor.u32 %v448, 2147483648
    %v450 = vmul.f32 %v449, 1.442695
    %v451 = vpow.pop %v450
    %v452 = vadd.f32 %v451, 1.0
    %v453 = vrcp.pop %v452
    %v454 = vmul.f32 %v452, %v453
    %v455 = vsub.f32 1.0, %v454
    %v456 = vmul.f32 %v453, %v455
    %v457 = vadd.f32 %v453, %v456
    %vm458 = vweird.f32 %v452
    %vm459 = vweird.f32 %v453
    %vm460 = vmor %vm458, %vm459
    %v461 = vsel %vm460, %v453, %v457
    %v462 = vand.u32 2147483647, %v452
    %vm463 = vcmp.eq.f32.partialorder %v462, 8.507059e+37
    %v464 = vand.u32 %v452, 2147483648
    %v465 = vor.u32 1.1754944e-38, %v464
    %v466 = vsel %vm463, %v465, %v461
    %v467 = vmul.f32 1.0, %v466
    %v468 = vadd.f32 %v443, %v324
    %v470 = vrot.slane %v468, 4
    %471 = vrot.lane.b32.xlu0 %v470, 64
    %v472 = vpop.permute.xlu0 %471
    %v474 = vmul.f32 %v467, %v472
    %476 = vrot.lane.b32.xlu0 %v474, 64
    %v477 = vpop.permute.xlu0 %476
    %v479 = vadd.f32 %v180, %v477
    %v480 = vtanh.pop %v479
    %v481 = vsub.f32 1.0, %v467
    %483 = vrot.lane.b32.xlu0 %v480, 96
    %v484 = vpop.permute.xlu0 %483
    %v486 = vmul.f32 %v481, %v484
    %v487 = vrot.slane %v348, 6
    %v489 = vmul.f32 %v467, %v487
    %v490 = vadd.f32 %v486, %v489
    %492 = vrot.lane.b32.xlu0 %v490, 96
    %v493 = vpop.permute.xlu0 %492
    %v496 = vrot.slane %v419, 4
    %v498 = vsel %vm220, %v493, %v496
    %v500 = vrot.slane %v498, 4
    %v501 = vsel %vm359, %v500, 0
    %503 = vmatpush.msra.mxu0 0.0
    %504 = vmatpush.msra.mxu0 0.0
    %505 = vmatpush.msra.mxu0 0.0
    %506 = vmatpush.msra.mxu0 0.0
    %507 = vmatpush.msra.mxu0 0.0
    %508 = vmatpush.msra.mxu0 0.0
    %509 = vmatpush.msra.mxu0 0.0
    %510 = vmatpush.msra.mxu0 0.0
    %511 = vmatpush.msra.mxu0 %v58
    %512 = vmatpush.msra.mxu0 %v57
    %513 = vmatpush.msra.mxu0 %v56
    %514 = vmatpush.msra.mxu0 %v55
    %515 = vmatpush.msra.mxu0 %v54
    %516 = vmatpush.msra.mxu0 %v53
    %517 = vmatpush.msra.mxu0 %v52
    %518 = vmatpush.msra.mxu0 %v51
    %519 = vmatmul.f32.gmra.mxu0 %v501
    %v520 = vpop.f32.mrf.mxu0
    %v521 = vadd.f32 %v45, %v520
    %522 = vdwg.mxu0
    %v523 = vxor.u32 %v521, 2147483648
    %v524 = vmul.f32 %v523, 1.442695
    %v525 = vpow.pop %v524
    %v526 = vadd.f32 %v525, 1.0
    %v527 = vrcp.pop %v526
    %v528 = vmul.f32 %v526, %v527
    %v529 = vsub.f32 1.0, %v528
    %v530 = vmul.f32 %v527, %v529
    %v531 = vadd.f32 %v527, %v530
    %vm532 = vweird.f32 %v526
    %vm533 = vweird.f32 %v527
    %vm534 = vmor %vm532, %vm533
    %v535 = vsel %vm534, %v527, %v531
    %v536 = vand.u32 2147483647, %v526
    %vm537 = vcmp.eq.f32.partialorder %v536, 8.507059e+37
    %v538 = vand.u32 %v526, 2147483648
    %v539 = vor.u32 1.1754944e-38, %v538
    %v540 = vsel %vm537, %v539, %v535
    %v541 = vmul.f32 1.0, %v540
    %543 = vrot.lane.b32.xlu0 %v521, 32
    %v544 = vpop.permute.xlu0 %543
    %v546 = vmul.f32 %v541, %v544
    %548 = vrot.lane.b32.xlu0 %v546, 64
    %v549 = vpop.permute.xlu0 %548
    %v551 = vadd.f32 %v521, %v549
    %v552 = vtanh.pop %v551
    %v553 = vsub.f32 1.0, %v541
    %555 = vrot.lane.b32.xlu0 %v552, 96
    %v556 = vpop.permute.xlu0 %555
    %v558 = vmul.f32 %v553, %v556
    %v559 = vmul.f32 %v541, %v419
    %v560 = vadd.f32 %v558, %v559
    %v561 = vrot.slane %v490, 4
    %562 = vrot.lane.b32.xlu0 %v561, 96
    %v563 = vpop.permute.xlu0 %562
    %v564 = vsel %vm220, %v563, 0
    %566 = vmatpush.msra.mxu0 0.0
    %567 = vmatpush.msra.mxu0 0.0
    %568 = vmatpush.msra.mxu0 0.0
    %569 = vmatpush.msra.mxu0 0.0
    %570 = vmatpush.msra.mxu0 0.0
    %571 = vmatpush.msra.mxu0 0.0
    %572 = vmatpush.msra.mxu0 0.0
    %573 = vmatpush.msra.mxu0 0.0
    %574 = vmatpush.msra.mxu0 0.0
    %575 = vmatpush.msra.mxu0 0.0
    %576 = vmatpush.msra.mxu0 0.0
    %577 = vmatpush.msra.mxu0 0.0
    %578 = vmatpush.msra.mxu0 %v50
    %579 = vmatpush.msra.mxu0 %v49
    %580 = vmatpush.msra.mxu0 %v48
    %581 = vmatpush.msra.mxu0 %v47
    %582 = vmatmul.f32.gmra.mxu0 %v564
    %v583 = vpop.f32.mrf.mxu0
    %v584 = vadd.f32 0.0, %v583
    %585 = vdwg.mxu0
    %v587 = vrot.slane %v584, 2
    %v589 = vadd.f32 %v180, %v587
    %v590 = vxor.u32 %v589, 2147483648
    %v591 = vmul.f32 %v590, 1.442695
    %v592 = vpow.pop %v591
    %v593 = vadd.f32 %v592, 1.0
    %v594 = vrcp.pop %v593
    %v595 = vmul.f32 %v593, %v594
    %v596 = vsub.f32 1.0, %v595
    %v597 = vmul.f32 %v594, %v596
    %v598 = vadd.f32 %v594, %v597
    %vm599 = vweird.f32 %v593
    %vm600 = vweird.f32 %v594
    %vm601 = vmor %vm599, %vm600
    %v602 = vsel %vm601, %v594, %v598
    %v603 = vand.u32 2147483647, %v593
    %vm604 = vcmp.eq.f32.partialorder %v603, 8.507059e+37
    %v605 = vand.u32 %v593, 2147483648
    %v606 = vor.u32 1.1754944e-38, %v605
    %v607 = vsel %vm604, %v606, %v602
    %v608 = vmul.f32 1.0, %v607
    %v609 = vadd.f32 %v584, %v324
    %v611 = vrot.slane %v609, 2
    %612 = vrot.lane.b32.xlu0 %v611, 64
    %v613 = vpop.permute.xlu0 %612
    %v615 = vmul.f32 %v608, %v613
    %617 = vrot.lane.b32.xlu0 %v615, 64
    %v618 = vpop.permute.xlu0 %617
    %v620 = vadd.f32 %v180, %v618
    %v621 = vtanh.pop %v620
    %v622 = vsub.f32 1.0, %v608
    %624 = vrot.lane.b32.xlu0 %v621, 96
    %v625 = vpop.permute.xlu0 %624
    %v627 = vmul.f32 %v622, %v625
    %v628 = vrot.slane %v490, 6
    %v630 = vmul.f32 %v608, %v628
    %v631 = vadd.f32 %v627, %v630
    %633 = vrot.lane.b32.xlu0 %v631, 96
    %v634 = vpop.permute.xlu0 %633
    %v637 = vrot.slane %v560, 2
    %v639 = vsel %vm220, %v634, %v637
    %v641 = vrot.slane %v639, 6
    %v642 = vsel %vm359, %v641, 0
    %644 = vmatpush.msra.mxu0 0.0
    %645 = vmatpush.msra.mxu0 0.0
    %646 = vmatpush.msra.mxu0 0.0
    %647 = vmatpush.msra.mxu0 0.0
    %648 = vmatpush.msra.mxu0 0.0
    %649 = vmatpush.msra.mxu0 0.0
    %650 = vmatpush.msra.mxu0 0.0
    %651 = vmatpush.msra.mxu0 0.0
    %652 = vmatpush.msra.mxu0 %v58
    %653 = vmatpush.msra.mxu0 %v57
    %654 = vmatpush.msra.mxu0 %v56
    %655 = vmatpush.msra.mxu0 %v55
    %656 = vmatpush.msra.mxu0 %v54
    %657 = vmatpush.msra.mxu0 %v53
    %658 = vmatpush.msra.mxu0 %v52
    %659 = vmatpush.msra.mxu0 %v51
    %660 = vmatmul.f32.gmra.mxu0 %v642
    %v661 = vpop.f32.mrf.mxu0
    %v662 = vadd.f32 %v45, %v661
    %663 = vdwg.mxu0
    %v664 = vxor.u32 %v662, 2147483648
    %v665 = vmul.f32 %v664, 1.442695
    %v666 = vpow.pop %v665
    %v667 = vadd.f32 %v666, 1.0
    %v668 = vrcp.pop %v667
    %v669 = vmul.f32 %v667, %v668
    %v670 = vsub.f32 1.0, %v669
    %v671 = vmul.f32 %v668, %v670
    %v672 = vadd.f32 %v668, %v671
    %vm673 = vweird.f32 %v667
    %vm674 = vweird.f32 %v668
    %vm675 = vmor %vm673, %vm674
    %v676 = vsel %vm675, %v668, %v672
    %v677 = vand.u32 2147483647, %v667
    %vm678 = vcmp.eq.f32.partialorder %v677, 8.507059e+37
    %v679 = vand.u32 %v667, 2147483648
    %v680 = vor.u32 1.1754944e-38, %v679
    %v681 = vsel %vm678, %v680, %v676
    %v682 = vmul.f32 1.0, %v681
    %684 = vrot.lane.b32.xlu0 %v662, 32
    %v685 = vpop.permute.xlu0 %684
    %v687 = vmul.f32 %v682, %v685
    %689 = vrot.lane.b32.xlu0 %v687, 64
    %v690 = vpop.permute.xlu0 %689
    %v692 = vadd.f32 %v662, %v690
    %v693 = vtanh.pop %v692
    %v694 = vsub.f32 1.0, %v682
    %696 = vrot.lane.b32.xlu0 %v693, 96
    %v697 = vpop.permute.xlu0 %696
    %v699 = vmul.f32 %v694, %v697
    %v700 = vmul.f32 %v682, %v560
    %v701 = vadd.f32 %v699, %v700
    %v702 = vrot.slane %v631, 6
    %703 = vrot.lane.b32.xlu0 %v702, 96
    %v704 = vpop.permute.xlu0 %703
    %v705 = vsel %vm220, %v704, 0
    %707 = vmatpush.msra.mxu0 0.0
    %708 = vmatpush.msra.mxu0 0.0
    %709 = vmatpush.msra.mxu0 0.0
    %710 = vmatpush.msra.mxu0 0.0
    %711 = vmatpush.msra.mxu0 0.0
    %712 = vmatpush.msra.mxu0 0.0
    %713 = vmatpush.msra.mxu0 0.0
    %714 = vmatpush.msra.mxu0 0.0
    %715 = vmatpush.msra.mxu0 0.0
    %716 = vmatpush.msra.mxu0 0.0
    %717 = vmatpush.msra.mxu0 0.0
    %718 = vmatpush.msra.mxu0 0.0
    %719 = vmatpush.msra.mxu0 %v50
    %720 = vmatpush.msra.mxu0 %v49
    %721 = vmatpush.msra.mxu0 %v48
    %722 = vmatpush.msra.mxu0 %v47
    %723 = vmatmul.f32.gmra.mxu0 %v705
    %v724 = vpop.f32.mrf.mxu0
    %v725 = vadd.f32 0.0, %v724
    %726 = vdwg.mxu0
    %v727 = vadd.f32 %v183, %v725
    %v728 = vxor.u32 %v727, 2147483648
    %v729 = vmul.f32 %v728, 1.442695
    %v730 = vpow.pop %v729
    %v731 = vadd.f32 %v730, 1.0
    %v732 = vrcp.pop %v731
    %v733 = vmul.f32 %v731, %v732
    %v734 = vsub.f32 1.0, %v733
    %v735 = vmul.f32 %v732, %v734
    %v736 = vadd.f32 %v732, %v735
    %vm737 = vweird.f32 %v731
    %vm738 = vweird.f32 %v732
    %vm739 = vmor %vm737, %vm738
    %v740 = vsel %vm739, %v732, %v736
    %v741 = vand.u32 2147483647, %v731
    %vm742 = vcmp.eq.f32.partialorder %v741, 8.507059e+37
    %v743 = vand.u32 %v731, 2147483648
    %v744 = vor.u32 1.1754944e-38, %v743
    %v745 = vsel %vm742, %v744, %v740
    %v746 = vmul.f32 1.0, %v745
    %v747 = vadd.f32 %v725, %v324
    %749 = vrot.lane.b32.xlu0 %v747, 64
    %v750 = vpop.permute.xlu0 %749
    %v752 = vmul.f32 %v746, %v750
    %754 = vrot.lane.b32.xlu0 %v752, 64
    %v755 = vpop.permute.xlu0 %754
    %v757 = vadd.f32 %v183, %v755
    %v758 = vtanh.pop %v757
    %v759 = vsub.f32 1.0, %v746
    %761 = vrot.lane.b32.xlu0 %v758, 96
    %v762 = vpop.permute.xlu0 %761
    %v764 = vmul.f32 %v759, %v762
    %v766 = vmul.f32 %v746, %v702
    %v767 = vadd.f32 %v764, %v766
    %769 = vrot.lane.b32.xlu0 %v767, 96
    %v770 = vpop.permute.xlu0 %769
    %v772 = vsel %vm220, %v770, %v701
    %v774 = vsel %vm359, %v772, 0
    %776 = vmatpush.msra.mxu0 0.0
    %777 = vmatpush.msra.mxu0 0.0
    %778 = vmatpush.msra.mxu0 0.0
    %779 = vmatpush.msra.mxu0 0.0
    %780 = vmatpush.msra.mxu0 0.0
    %781 = vmatpush.msra.mxu0 0.0
    %782 = vmatpush.msra.mxu0 0.0
    %783 = vmatpush.msra.mxu0 0.0
    %784 = vmatpush.msra.mxu0 %v58
    %785 = vmatpush.msra.mxu0 %v57
    %786 = vmatpush.msra.mxu0 %v56
    %787 = vmatpush.msra.mxu0 %v55
    %788 = vmatpush.msra.mxu0 %v54
    %789 = vmatpush.msra.mxu0 %v53
    %790 = vmatpush.msra.mxu0 %v52
    %791 = vmatpush.msra.mxu0 %v51
    %792 = vmatmul.f32.gmra.mxu0 %v774
    %v793 = vpop.f32.mrf.mxu0
    %v794 = vadd.f32 %v45, %v793
    %795 = vdwg.mxu0
    %v796 = vxor.u32 %v794, 2147483648
    %v797 = vmul.f32 %v796, 1.442695
    %v798 = vpow.pop %v797
    %v799 = vadd.f32 %v798, 1.0
    %v800 = vrcp.pop %v799
    %v801 = vmul.f32 %v799, %v800
    %v802 = vsub.f32 1.0, %v801
    %v803 = vmul.f32 %v800, %v802
    %v804 = vadd.f32 %v800, %v803
    %vm805 = vweird.f32 %v799
    %vm806 = vweird.f32 %v800
    %vm807 = vmor %vm805, %vm806
    %v808 = vsel %vm807, %v800, %v804
    %v809 = vand.u32 2147483647, %v799
    %vm810 = vcmp.eq.f32.partialorder %v809, 8.507059e+37
    %v811 = vand.u32 %v799, 2147483648
    %v812 = vor.u32 1.1754944e-38, %v811
    %v813 = vsel %vm810, %v812, %v808
    %v814 = vmul.f32 1.0, %v813
    %816 = vrot.lane.b32.xlu0 %v794, 32
    %v817 = vpop.permute.xlu0 %816
    %v819 = vmul.f32 %v814, %v817
    %821 = vrot.lane.b32.xlu0 %v819, 64
    %v822 = vpop.permute.xlu0 %821
    %v824 = vadd.f32 %v794, %v822
    %v825 = vtanh.pop %v824
    %v826 = vsub.f32 1.0, %v814
    %828 = vrot.lane.b32.xlu0 %v825, 96
    %v829 = vpop.permute.xlu0 %828
    %v831 = vmul.f32 %v826, %v829
    %v832 = vmul.f32 %v814, %v701
    %v833 = vadd.f32 %v831, %v832
    %v834 = vsel %vm220, %v770, 0
    %836 = vmatpush.msra.mxu0 0.0
    %837 = vmatpush.msra.mxu0 0.0
    %838 = vmatpush.msra.mxu0 0.0
    %839 = vmatpush.msra.mxu0 0.0
    %840 = vmatpush.msra.mxu0 0.0
    %841 = vmatpush.msra.mxu0 0.0
    %842 = vmatpush.msra.mxu0 0.0
    %843 = vmatpush.msra.mxu0 0.0
    %844 = vmatpush.msra.mxu0 0.0
    %845 = vmatpush.msra.mxu0 0.0
    %846 = vmatpush.msra.mxu0 0.0
    %847 = vmatpush.msra.mxu0 0.0
    %848 = vmatpush.msra.mxu0 %v50
    %849 = vmatpush.msra.mxu0 %v49
    %850 = vmatpush.msra.mxu0 %v48
    %851 = vmatpush.msra.mxu0 %v47
    %852 = vmatmul.f32.gmra.mxu0 %v834
    %v853 = vpop.f32.mrf.mxu0
    %v854 = vadd.f32 0.0, %v853
    %855 = vdwg.mxu0
    %v857 = vrot.slane %v854, 6
    %v859 = vadd.f32 %v183, %v857
    %v860 = vxor.u32 %v859, 2147483648
    %v861 = vmul.f32 %v860, 1.442695
    %v862 = vpow.pop %v861
    %v863 = vadd.f32 %v862, 1.0
    %v864 = vrcp.pop %v863
    %v865 = vmul.f32 %v863, %v864
    %v866 = vsub.f32 1.0, %v865
    %v867 = vmul.f32 %v864, %v866
    %v868 = vadd.f32 %v864, %v867
    %vm869 = vweird.f32 %v863
    %vm870 = vweird.f32 %v864
    %vm871 = vmor %vm869, %vm870
    %v872 = vsel %vm871, %v864, %v868
    %v873 = vand.u32 2147483647, %v863
    %vm874 = vcmp.eq.f32.partialorder %v873, 8.507059e+37
    %v875 = vand.u32 %v863, 2147483648
    %v876 = vor.u32 1.1754944e-38, %v875
    %v877 = vsel %vm874, %v876, %v872
    %v878 = vmul.f32 1.0, %v877
    %v879 = vadd.f32 %v854, %v324
    %v881 = vrot.slane %v879, 6
    %882 = vrot.lane.b32.xlu0 %v881, 64
    %v883 = vpop.permute.xlu0 %882
    %v885 = vmul.f32 %v878, %v883
    %887 = vrot.lane.b32.xlu0 %v885, 64
    %v888 = vpop.permute.xlu0 %887
    %v890 = vadd.f32 %v183, %v888
    %v891 = vtanh.pop %v890
    %v892 = vsub.f32 1.0, %v878
    %894 = vrot.lane.b32.xlu0 %v891, 96
    %v895 = vpop.permute.xlu0 %894
    %v897 = vmul.f32 %v892, %v895
    %v898 = vrot.slane %v767, 6
    %v900 = vmul.f32 %v878, %v898
    %v901 = vadd.f32 %v897, %v900
    %903 = vrot.lane.b32.xlu0 %v901, 96
    %v904 = vpop.permute.xlu0 %903
    %v907 = vrot.slane %v833, 6
    %v909 = vsel %vm220, %v904, %v907
    %v911 = vrot.slane %v909, 2
    %v912 = vsel %vm359, %v911, 0
    %914 = vmatpush.msra.mxu0 0.0
    %915 = vmatpush.msra.mxu0 0.0
    %916 = vmatpush.msra.mxu0 0.0
    %917 = vmatpush.msra.mxu0 0.0
    %918 = vmatpush.msra.mxu0 0.0
    %919 = vmatpush.msra.mxu0 0.0
    %920 = vmatpush.msra.mxu0 0.0
    %921 = vmatpush.msra.mxu0 0.0
    %922 = vmatpush.msra.mxu0 %v58
    %923 = vmatpush.msra.mxu0 %v57
    %924 = vmatpush.msra.mxu0 %v56
    %925 = vmatpush.msra.mxu0 %v55
    %926 = vmatpush.msra.mxu0 %v54
    %927 = vmatpush.msra.mxu0 %v53
    %928 = vmatpush.msra.mxu0 %v52
    %929 = vmatpush.msra.mxu0 %v51
    %930 = vmatmul.f32.gmra.mxu0 %v912
    %v931 = vpop.f32.mrf.mxu0
    %v932 = vadd.f32 %v45, %v931
    %933 = vdwg.mxu0
    %v934 = vxor.u32 %v932, 2147483648
    %v935 = vmul.f32 %v934, 1.442695
    %v936 = vpow.pop %v935
    %v937 = vadd.f32 %v936, 1.0
    %v938 = vrcp.pop %v937
    %v939 = vmul.f32 %v937, %v938
    %v940 = vsub.f32 1.0, %v939
    %v941 = vmul.f32 %v938, %v940
    %v942 = vadd.f32 %v938, %v941
    %vm943 = vweird.f32 %v937
    %vm944 = vweird.f32 %v938
    %vm945 = vmor %vm943, %vm944
    %v946 = vsel %vm945, %v938, %v942
    %v947 = vand.u32 2147483647, %v937
    %vm948 = vcmp.eq.f32.partialorder %v947, 8.507059e+37
    %v949 = vand.u32 %v937, 2147483648
    %v950 = vor.u32 1.1754944e-38, %v949
    %v951 = vsel %vm948, %v950, %v946
    %v952 = vmul.f32 1.0, %v951
    %954 = vrot.lane.b32.xlu0 %v932, 32
    %v955 = vpop.permute.xlu0 %954
    %v957 = vmul.f32 %v952, %v955
    %959 = vrot.lane.b32.xlu0 %v957, 64
    %v960 = vpop.permute.xlu0 %959
    %v962 = vadd.f32 %v932, %v960
    %v963 = vtanh.pop %v962
    %v964 = vsub.f32 1.0, %v952
    %966 = vrot.lane.b32.xlu0 %v963, 96
    %v967 = vpop.permute.xlu0 %966
    %v969 = vmul.f32 %v964, %v967
    %v970 = vmul.f32 %v952, %v833
    %v971 = vadd.f32 %v969, %v970
    %v972 = vrot.slane %v901, 2
    %973 = vrot.lane.b32.xlu0 %v972, 96
    %v974 = vpop.permute.xlu0 %973
    %v975 = vsel %vm220, %v974, 0
    %977 = vmatpush.msra.mxu0 0.0
    %978 = vmatpush.msra.mxu0 0.0
    %979 = vmatpush.msra.mxu0 0.0
    %980 = vmatpush.msra.mxu0 0.0
    %981 = vmatpush.msra.mxu0 0.0
    %982 = vmatpush.msra.mxu0 0.0
    %983 = vmatpush.msra.mxu0 0.0
    %984 = vmatpush.msra.mxu0 0.0
    %985 = vmatpush.msra.mxu0 0.0
    %986 = vmatpush.msra.mxu0 0.0
    %987 = vmatpush.msra.mxu0 0.0
    %988 = vmatpush.msra.mxu0 0.0
    %989 = vmatpush.msra.mxu0 %v50
    %990 = vmatpush.msra.mxu0 %v49
    %991 = vmatpush.msra.mxu0 %v48
    %992 = vmatpush.msra.mxu0 %v47
    %993 = vmatmul.f32.gmra.mxu0 %v975
    %v994 = vpop.f32.mrf.mxu0
    %v995 = vadd.f32 0.0, %v994
    %996 = vdwg.mxu0
    %v998 = vrot.slane %v995, 4
    %v1000 = vadd.f32 %v183, %v998
    %v1001 = vxor.u32 %v1000, 2147483648
    %v1002 = vmul.f32 %v1001, 1.442695
    %v1003 = vpow.pop %v1002
    %v1004 = vadd.f32 %v1003, 1.0
    %v1005 = vrcp.pop %v1004
    %v1006 = vmul.f32 %v1004, %v1005
    %v1007 = vsub.f32 1.0, %v1006
    %v1008 = vmul.f32 %v1005, %v1007
    %v1009 = vadd.f32 %v1005, %v1008
    %vm1010 = vweird.f32 %v1004
    %vm1011 = vweird.f32 %v1005
    %vm1012 = vmor %vm1010, %vm1011
    %v1013 = vsel %vm1012, %v1005, %v1009
    %v1014 = vand.u32 2147483647, %v1004
    %vm1015 = vcmp.eq.f32.partialorder %v1014, 8.507059e+37
    %v1016 = vand.u32 %v1004, 2147483648
    %v1017 = vor.u32 1.1754944e-38, %v1016
    %v1018 = vsel %vm1015, %v1017, %v1013
    %v1019 = vmul.f32 1.0, %v1018
    %v1020 = vadd.f32 %v995, %v324
    %v1022 = vrot.slane %v1020, 4
    %1023 = vrot.lane.b32.xlu0 %v1022, 64
    %v1024 = vpop.permute.xlu0 %1023
    %v1026 = vmul.f32 %v1019, %v1024
    %1028 = vrot.lane.b32.xlu0 %v1026, 64
    %v1029 = vpop.permute.xlu0 %1028
    %v1031 = vadd.f32 %v183, %v1029
    %v1032 = vtanh.pop %v1031
    %v1033 = vsub.f32 1.0, %v1019
    %1035 = vrot.lane.b32.xlu0 %v1032, 96
    %v1036 = vpop.permute.xlu0 %1035
    %v1038 = vmul.f32 %v1033, %v1036
    %v1039 = vrot.slane %v901, 6
    %v1041 = vmul.f32 %v1019, %v1039
    %v1042 = vadd.f32 %v1038, %v1041
    %1044 = vrot.lane.b32.xlu0 %v1042, 96
    %v1045 = vpop.permute.xlu0 %1044
    %v1048 = vrot.slane %v971, 4
    %v1050 = vsel %vm220, %v1045, %v1048
    %v1052 = vrot.slane %v1050, 4
    %v1053 = vsel %vm359, %v1052, 0
    %1055 = vmatpush.msra.mxu0 0.0
    %1056 = vmatpush.msra.mxu0 0.0
    %1057 = vmatpush.msra.mxu0 0.0
    %1058 = vmatpush.msra.mxu0 0.0
    %1059 = vmatpush.msra.mxu0 0.0
    %1060 = vmatpush.msra.mxu0 0.0
    %1061 = vmatpush.msra.mxu0 0.0
    %1062 = vmatpush.msra.mxu0 0.0
    %1063 = vmatpush.msra.mxu0 %v58
    %1064 = vmatpush.msra.mxu0 %v57
    %1065 = vmatpush.msra.mxu0 %v56
    %1066 = vmatpush.msra.mxu0 %v55
    %1067 = vmatpush.msra.mxu0 %v54
    %1068 = vmatpush.msra.mxu0 %v53
    %1069 = vmatpush.msra.mxu0 %v52
    %1070 = vmatpush.msra.mxu0 %v51
    %1071 = vmatmul.f32.gmra.mxu0 %v1053
    %v1072 = vpop.f32.mrf.mxu0
    %v1073 = vadd.f32 %v45, %v1072
    %1074 = vdwg.mxu0
    %v1075 = vxor.u32 %v1073, 2147483648
    %v1076 = vmul.f32 %v1075, 1.442695
    %v1077 = vpow.pop %v1076
    %v1078 = vadd.f32 %v1077, 1.0
    %v1079 = vrcp.pop %v1078
    %v1080 = vmul.f32 %v1078, %v1079
    %v1081 = vsub.f32 1.0, %v1080
    %v1082 = vmul.f32 %v1079, %v1081
    %v1083 = vadd.f32 %v1079, %v1082
    %vm1084 = vweird.f32 %v1078
    %vm1085 = vweird.f32 %v1079
    %vm1086 = vmor %vm1084, %vm1085
    %v1087 = vsel %vm1086, %v1079, %v1083
    %v1088 = vand.u32 2147483647, %v1078
    %vm1089 = vcmp.eq.f32.partialorder %v1088, 8.507059e+37
    %v1090 = vand.u32 %v1078, 2147483648
    %v1091 = vor.u32 1.1754944e-38, %v1090
    %v1092 = vsel %vm1089, %v1091, %v1087
    %v1093 = vmul.f32 1.0, %v1092
    %1095 = vrot.lane.b32.xlu0 %v1073, 32
    %v1096 = vpop.permute.xlu0 %1095
    %v1098 = vmul.f32 %v1093, %v1096
    %1100 = vrot.lane.b32.xlu0 %v1098, 64
    %v1101 = vpop.permute.xlu0 %1100
    %v1103 = vadd.f32 %v1073, %v1101
    %v1104 = vtanh.pop %v1103
    %v1105 = vsub.f32 1.0, %v1093
    %1107 = vrot.lane.b32.xlu0 %v1104, 96
    %v1108 = vpop.permute.xlu0 %1107
    %v1110 = vmul.f32 %v1105, %v1108
    %v1111 = vmul.f32 %v1093, %v971
    %v1112 = vadd.f32 %v1110, %v1111
    %v1113 = vrot.slane %v1042, 4
    %1114 = vrot.lane.b32.xlu0 %v1113, 96
    %v1115 = vpop.permute.xlu0 %1114
    %v1116 = vsel %vm220, %v1115, 0
    %1118 = vmatpush.msra.mxu0 0.0
    %1119 = vmatpush.msra.mxu0 0.0
    %1120 = vmatpush.msra.mxu0 0.0
    %1121 = vmatpush.msra.mxu0 0.0
    %1122 = vmatpush.msra.mxu0 0.0
    %1123 = vmatpush.msra.mxu0 0.0
    %1124 = vmatpush.msra.mxu0 0.0
    %1125 = vmatpush.msra.mxu0 0.0
    %1126 = vmatpush.msra.mxu0 0.0
    %1127 = vmatpush.msra.mxu0 0.0
    %1128 = vmatpush.msra.mxu0 0.0
    %1129 = vmatpush.msra.mxu0 0.0
    %1130 = vmatpush.msra.mxu0 %v50
    %1131 = vmatpush.msra.mxu0 %v49
    %1132 = vmatpush.msra.mxu0 %v48
    %1133 = vmatpush.msra.mxu0 %v47
    %1134 = vmatmul.f32.gmra.mxu0 %v1116
    %v1135 = vpop.f32.mrf.mxu0
    %v1136 = vadd.f32 0.0, %v1135
    %1137 = vdwg.mxu0
    %v1139 = vrot.slane %v1136, 2
    %v1141 = vadd.f32 %v183, %v1139
    %v1142 = vxor.u32 %v1141, 2147483648
    %v1143 = vmul.f32 %v1142, 1.442695
    %v1144 = vpow.pop %v1143
    %v1145 = vadd.f32 %v1144, 1.0
    %v1146 = vrcp.pop %v1145
    %v1147 = vmul.f32 %v1145, %v1146
    %v1148 = vsub.f32 1.0, %v1147
    %v1149 = vmul.f32 %v1146, %v1148
    %v1150 = vadd.f32 %v1146, %v1149
    %vm1151 = vweird.f32 %v1145
    %vm1152 = vweird.f32 %v1146
    %vm1153 = vmor %vm1151, %vm1152
    %v1154 = vsel %vm1153, %v1146, %v1150
    %v1155 = vand.u32 2147483647, %v1145
    %vm1156 = vcmp.eq.f32.partialorder %v1155, 8.507059e+37
    %v1157 = vand.u32 %v1145, 2147483648
    %v1158 = vor.u32 1.1754944e-38, %v1157
    %v1159 = vsel %vm1156, %v1158, %v1154
    %v1160 = vmul.f32 1.0, %v1159
    %v1161 = vadd.f32 %v1136, %v324
    %v1163 = vrot.slane %v1161, 2
    %1164 = vrot.lane.b32.xlu0 %v1163, 64
    %v1165 = vpop.permute.xlu0 %1164
    %v1167 = vmul.f32 %v1160, %v1165
    %1169 = vrot.lane.b32.xlu0 %v1167, 64
    %v1170 = vpop.permute.xlu0 %1169
    %v1172 = vadd.f32 %v183, %v1170
    %v1173 = vtanh.pop %v1172
    %v1174 = vsub.f32 1.0, %v1160
    %1176 = vrot.lane.b32.xlu0 %v1173, 96
    %v1177 = vpop.permute.xlu0 %1176
    %v1179 = vmul.f32 %v1174, %v1177
    %v1180 = vrot.slane %v1042, 6
    %v1182 = vmul.f32 %v1160, %v1180
    %v1183 = vadd.f32 %v1179, %v1182
    %1185 = vrot.lane.b32.xlu0 %v1183, 96
    %v1186 = vpop.permute.xlu0 %1185
    %v1189 = vrot.slane %v1112, 2
    %v1191 = vsel %vm220, %v1186, %v1189
    %v1193 = vrot.slane %v1191, 6
    %v1194 = vsel %vm359, %v1193, 0
    %1196 = vmatpush.msra.mxu0 0.0
    %1197 = vmatpush.msra.mxu0 0.0
    %1198 = vmatpush.msra.mxu0 0.0
    %1199 = vmatpush.msra.mxu0 0.0
    %1200 = vmatpush.msra.mxu0 0.0
    %1201 = vmatpush.msra.mxu0 0.0
    %1202 = vmatpush.msra.mxu0 0.0
    %1203 = vmatpush.msra.mxu0 0.0
    %1204 = vmatpush.msra.mxu0 %v58
    %1205 = vmatpush.msra.mxu0 %v57
    %1206 = vmatpush.msra.mxu0 %v56
    %1207 = vmatpush.msra.mxu0 %v55
    %1208 = vmatpush.msra.mxu0 %v54
    %1209 = vmatpush.msra.mxu0 %v53
    %1210 = vmatpush.msra.mxu0 %v52
    %1211 = vmatpush.msra.mxu0 %v51
    %1212 = vmatmul.f32.gmra.mxu0 %v1194
    %v1213 = vpop.f32.mrf.mxu0
    %v1214 = vadd.f32 %v45, %v1213
    %1215 = vdwg.mxu0
    %v1216 = vxor.u32 %v1214, 2147483648
    %v1217 = vmul.f32 %v1216, 1.442695
    %v1218 = vpow.pop %v1217
    %v1219 = vadd.f32 %v1218, 1.0
    %v1220 = vrcp.pop %v1219
    %v1221 = vmul.f32 %v1219, %v1220
    %v1222 = vsub.f32 1.0, %v1221
    %v1223 = vmul.f32 %v1220, %v1222
    %v1224 = vadd.f32 %v1220, %v1223
    %vm1225 = vweird.f32 %v1219
    %vm1226 = vweird.f32 %v1220
    %vm1227 = vmor %vm1225, %vm1226
    %v1228 = vsel %vm1227, %v1220, %v1224
    %v1229 = vand.u32 2147483647, %v1219
    %vm1230 = vcmp.eq.f32.partialorder %v1229, 8.507059e+37
    %v1231 = vand.u32 %v1219, 2147483648
    %v1232 = vor.u32 1.1754944e-38, %v1231
    %v1233 = vsel %vm1230, %v1232, %v1228
    %v1234 = vmul.f32 1.0, %v1233
    %1236 = vrot.lane.b32.xlu0 %v1214, 32
    %v1237 = vpop.permute.xlu0 %1236
    %v1239 = vmul.f32 %v1234, %v1237
    %1241 = vrot.lane.b32.xlu0 %v1239, 64
    %v1242 = vpop.permute.xlu0 %1241
    %v1244 = vadd.f32 %v1214, %v1242
    %v1245 = vtanh.pop %v1244
    %v1246 = vsub.f32 1.0, %v1234
    %1248 = vrot.lane.b32.xlu0 %v1245, 96
    %v1249 = vpop.permute.xlu0 %1248
    %v1251 = vmul.f32 %v1246, %v1249
    %v1252 = vmul.f32 %v1234, %v1112
    %v1253 = vadd.f32 %v1251, %v1252
    %vm1254 = vcmask 517376
    %v1255 = vsel %vm1254, %v1253, 0.0
    %v1256 = vrot.slane %v1255, 4
    %v1257 = vadd.f32 %v1255, %v1256
    %v1258 = vrot.slane %v1257, 2
    %v1259 = vadd.f32 %v1257, %v1258
    %v1260 = vrot.slane %v1259, 1
    %v1261 = vadd.f32 %v1259, %v1260
    %v1262 = vrcp.pop 2.0
    %v1263 = vmul.f32 2.0, %v1262
    %v1264 = vsub.f32 1.0, %v1263
    %v1265 = vmul.f32 %v1262, %v1264
    %v1266 = vadd.f32 %v1262, %v1265
    %vm1267 = vweird.f32 %v1262
    %v1268 = vsel %vm1267, %v1262, %v1266
    %v1269 = vmul.f32 %v1261, %v1268
    %v1270 = vsub.f32 %v1253, %v1269
    %v1271 = vmul.f32 %v1270, %v1270
    %v1272 = vsel %vm1254, %v1271, 0.0
    %v1273 = vrot.slane %v1272, 4
    %v1274 = vadd.f32 %v1272, %v1273
    %v1275 = vrot.slane %v1274, 2
    %v1276 = vadd.f32 %v1274, %v1275
    %v1277 = vrot.slane %v1276, 1
    %v1278 = vadd.f32 %v1276, %v1277
    %v1279 = vmul.f32 %v1278, %v1268
    %v1280 = vadd.f32 %v1279, 1e-05
    %v1281 = vrsqrt.pop %v1280
    %v1282 = vmul.f32 %v1281, %v1280
    %v1283 = vmul.f32 %v1282, %v1281
    %v1284 = vmul.f32 0.5, %v1283
    %v1285 = vsub.f32 1.5, %v1284
    %v1286 = vmul.f32 %v1281, %v1285
    %vm1287 = vweird.f32 %v1280
    %vm1288 = vweird.f32 %v1281
    %vm1289 = vmor %vm1287, %vm1288
    %v1290 = vsel %vm1289, %v1281, %v1286
    %v1291 = vmul.f32 %v1270, %v1290
    %v1292 = vmul.f32 %v1291, %v46
    %1293 = vrot.lane.b32.xlu0 %v46, 96
    %v1294 = vpop.permute.xlu0 %1293
    %v1296 = vadd.f32 %v1292, %v1294
    %v1297 = vmax.f32 %v1296, 0.0
    %v1298 = vld [vmem:[#allocation5 + $0x198] sm:$0xff]
    %v1299 = vld [vmem:[#allocation5 + $0x1a0] sm:$0xff]
    %v1300 = vld [vmem:[#allocation5 + $0x1a8] sm:$0xff]
    %v1301 = vld [vmem:[#allocation5 + $0x1b0] sm:$0xff]
    %v1302 = vperm.slane %v44, 3
    %1304 = vrot.lane.b32.xlu0 %v1297, 96
    %v1305 = vpop.permute.xlu0 %1304
    %v1306 = vsel %vm220, %v1305, 0
    %1308 = vmatpush.msra.mxu0 0.0
    %1309 = vmatpush.msra.mxu0 0.0
    %1310 = vmatpush.msra.mxu0 0.0
    %1311 = vmatpush.msra.mxu0 0.0
    %1312 = vmatpush.msra.mxu0 0.0
    %1313 = vmatpush.msra.mxu0 0.0
    %1314 = vmatpush.msra.mxu0 0.0
    %1315 = vmatpush.msra.mxu0 0.0
    %1316 = vmatpush.msra.mxu0 0.0
    %1317 = vmatpush.msra.mxu0 0.0
    %1318 = vmatpush.msra.mxu0 0.0
    %1319 = vmatpush.msra.mxu0 0.0
    %1320 = vmatpush.msra.mxu0 %v1301
    %1321 = vmatpush.msra.mxu0 %v1300
    %1322 = vmatpush.msra.mxu0 %v1299
    %1323 = vmatpush.msra.mxu0 %v1298
    %1324 = vmatmul.f32.gmra.mxu0 %v1306
    %v1325 = vpop.f32.mrf.mxu0
    %v1326 = vadd.f32 %v1302, %v1325
    %1327 = vdwg.mxu0
    %1328 = vst [vmem:[#allocation7] sm:$0x3] %v1326
    // Predicated region
    $region18: #{tpu_custom_call.1} parent=1 // pred_check
      _
    $region19: #{tpu_custom_call.1} parent=1 // pred_check_branch
      %1330 = sbr.rel (0) target = $region21
    $region20: #{tpu_custom_call.1} parent=1 // pred_region
      %1332 = vsyncadd [#allocation4], 0
      %s1334 = sshll.u32 [#allocation7], 4
      %s1335 = int_to_ptr.vmem [resolvable:$true] %s1334
      %s1336 = sshll.u32 %s2, 4
      %s1337 = int_to_ptr.hbm [resolvable:$true] %s1336
      %1339 = dma.vmem_to_hbm [thread:$0]  %s1335, 32, %s1337, [#allocation4]
    $region21: #{tpu_custom_call.1} parent=1 // pred_fallthru
      _
    // Predicated region
    $region22: #{tpu_custom_call.1} parent=1 // pred_check
      _
    $region23: #{tpu_custom_call.1} parent=1 // pred_check_branch
      %1341 = sbr.rel (0) target = $region25
    $region24: #{tpu_custom_call.1} parent=1 // pred_region
      %1343 = dma.done [#allocation4], 32
    $region25: #{tpu_custom_call.1} parent=1 // pred_fallthru
      _
    %1344 = vsyncpa [#allocation3], 1
    %1345 = vsyncpa [#allocation6], 1
    %1346 = vsyncpa [#allocation4], 1

</llo_original>
